<compile_context>
chip_gen: v5e
topology: v5e:2x2
jax: 0.10.0
libtpu: 0.0.40
codegen_flags: <defaults>
</compile_context>

<pallas_src>
import functools
import math

import jax
import jax.numpy as jnp
from jax.experimental import pallas as pl
from jax.experimental.pallas import tpu as pltpu


def _layernorm(x, g, b, eps=1e-5):
    mu = jnp.mean(x, axis=-1, keepdims=True)
    var = jnp.mean((x - mu) ** 2, axis=-1, keepdims=True)
    return (x - mu) * jax.lax.rsqrt(var + eps) * g + b


def _fused_transformer_kernel(
        x_ref,
        n0g_ref, n0b_ref,
        wq_ref, bq_ref, wk_ref, bk_ref, wv_ref, bv_ref,
        wo_ref, bo_ref,
        n1g_ref, n1b_ref,
        w0_ref, b0_ref, w1_ref, b1_ref,
        o_ref,
        ctx_scratch,
        *, n_layers, n_heads, block_batch, n_tokens, prenormalization,
        mm_dtype, approx_softmax_recip):
    """Full transformer forward on one (block_batch*N, D) activation slab."""
    bm, D = x_ref.shape                      # bm = block_batch * n_tokens
    dh = D // n_heads
    use_w_out = n_heads > 1                  # W_out is None when n_heads == 1

    x = x_ref[...]                           # (bm, D) float32, VMEM-resident

    # TODO(synk): for large n_layers replace this static unroll with a
    # lax.fori_loop (dynamic ref[l] indexing, layer-0 peeled for the prenorm
    # skip) or a layer grid axis that streams weights, to bound vreg pressure
    # and keep the stacked weights out of VMEM (matters on v7x's 64 MiB).
    for l in range(n_layers):
        # ---------------- attention residual block --------------------------
        xr = x
        if prenormalization and l > 0:       # layer 0 has no norm0 in prenorm
            xr = _layernorm(xr, n0g_ref[l], n0b_ref[l])
        xr_mm = xr.astype(mm_dtype)

        # QKV for every token in the block at once (1/sqrt(dh) already folded
        # into wq / bq by the wrapper).
        q = jnp.dot(xr_mm, wq_ref[l], preferred_element_type=jnp.float32) + bq_ref[l]
        k = jnp.dot(xr_mm, wk_ref[l], preferred_element_type=jnp.float32) + bk_ref[l]
        v = jnp.dot(xr_mm, wv_ref[l], preferred_element_type=jnp.float32) + bv_ref[l]

        # (bm, D) -> (block_batch, N, D): plain row-major reshape (free retile
        # for sublane-aligned N) -- no stack/concat copies.
        q3 = q.reshape(block_batch, n_tokens, D).astype(mm_dtype)
        k3 = k.reshape(block_batch, n_tokens, D).astype(mm_dtype)
        v3 = v.reshape(block_batch, n_tokens, D).astype(mm_dtype)

        for h in range(n_heads):             # static unroll (small H)
            hs = slice(h * dh, (h + 1) * dh)
            # Scores batched over the batch elements of this block.
            s = jnp.einsum('bqd,bkd->bqk', q3[:, :, hs], k3[:, :, hs],
                           preferred_element_type=jnp.float32)   # (b, N, N)
            s = s - jnp.max(s, axis=-1, keepdims=True)
            p = jnp.exp(s)
            denom = jnp.sum(p, axis=-1, keepdims=True)
            if approx_softmax_recip:
                p = p * pl.reciprocal(denom, approx=True)        # EUP slot
            else:
                p = p / denom                                    # exact (f32)
            ctx = jnp.einsum('bqk,bkd->bqd', p.astype(mm_dtype), v3[:, :, hs],
                             preferred_element_type=jnp.float32)  # (b, N, dh)
            # Park this head's context in its column block of the scratch so
            # the output projection is ONE (bm, D) @ (D, D) matmul (K = D).
            ctx_scratch[:, hs] = ctx.reshape(bm, dh).astype(ctx_scratch.dtype)

        if use_w_out:
            attn = jnp.dot(ctx_scratch[...], wo_ref[l],
                           preferred_element_type=jnp.float32) + bo_ref[l]
        else:                                 # n_heads == 1: W_out is None
            attn = ctx_scratch[...].astype(jnp.float32)
        x = x + attn
        if not prenormalization:              # postnorm: norm AFTER residual
            x = _layernorm(x, n0g_ref[l], n0b_ref[l])

        # ---------------- FFN residual block --------------------------------
        xr = x
        if prenormalization:
            xr = _layernorm(xr, n1g_ref[l], n1b_ref[l])
        h0 = jnp.dot(xr.astype(mm_dtype), w0_ref[l],
                     preferred_element_type=jnp.float32) + b0_ref[l]
        h0 = jnp.maximum(h0, 0.0)             # ReLU (f32)
        x = x + jnp.dot(h0.astype(mm_dtype), w1_ref[l],
                        preferred_element_type=jnp.float32) + b1_ref[l]
        if not prenormalization:
            x = _layernorm(x, n1g_ref[l], n1b_ref[l])

    # NOTE: with D=32 (<128 lanes) this store is lane-masked, but the whole
    # output is only a couple of KiB; for production D pad to a 128-multiple
    # to present a lane-dense slab instead.
    o_ref[...] = x


def _const_index_map(ndim):
    def im(i):
        return (0,) * ndim
    return im


def _vmem_limit_bytes():
    """Generation-aware VMEM limit (leave ~25% headroom, cap below 128 MiB)."""
    phys = 64 * 1024 * 1024        # conservative default (v7x-sized)
    try:
        info = pltpu.get_tpu_info()
        cap = getattr(info, 'vmem_capacity_bytes', None)
        if cap:
            phys = int(cap)
    except Exception:
        pass
    return min(int(phys * 0.75), 110 * 1024 * 1024)


def transformer_forward(x, params, *, n_heads, prenormalization=True,
                        mm_dtype=jnp.bfloat16, block_batch=None):
    """Runs the Transformer forward in one fused Pallas call with a
    batch-block 'parallel' grid axis (weights resident across steps)."""
    B, N, D = x.shape
    M = B * N
    L = params['wq'].shape[0]
    assert D % n_heads == 0
    dh = D // n_heads
    scale = 1.0 / math.sqrt(dh)

    # --- token-block grid: each block holds whole batch elements -----------
    if block_batch is None:
        target_rows = 256            # 256-row blocks feed v6e/v7x's 256-wide MXU
        block_batch = max(1, min(B, target_rows // max(N, 1)))
    block_batch = max(1, min(block_batch, B))
    while B % block_batch:
        block_batch -= 1
    block_m = block_batch * N
    if block_m % 8 != 0 and block_m != M:    # keep sublane-aligned blocks
        block_batch, block_m = B, M
    grid = (B // block_batch,)

    wdt = mm_dtype  # weight matrices shipped in the matmul dtype (bf16/f32)
    order = ['n0g', 'n0b', 'wq', 'bq', 'wk', 'bk', 'wv', 'bv', 'wo', 'bo',
             'n1g', 'n1b', 'w0', 'b0', 'w1', 'b1']
    prepared = {
        'n0g': params['n0g'], 'n0b': params['n0b'],
        'wq': (params['wq'] * scale).astype(wdt), 'bq': params['bq'] * scale,
        'wk': params['wk'].astype(wdt), 'bk': params['bk'],
        'wv': params['wv'].astype(wdt), 'bv': params['bv'],
        'wo': params['wo'].astype(wdt), 'bo': params['bo'],
        'n1g': params['n1g'], 'n1b': params['n1b'],
        'w0': params['w0'].astype(wdt), 'b0': params['b0'],
        'w1': params['w1'].astype(wdt), 'b1': params['b1'],
    }
    arg_list = [prepared[n] for n in order]

    x2 = x.reshape(M, D).astype(jnp.float32)

    # Activation/output: blocked over the grid.  Parameters: full-array
    # blocks with a constant index_map -> fetched once, resident across steps.
    # TODO(synk): for large L*D (v7x 64 MiB VMEM) stream weights per layer via
    # a layer grid axis / pltpu.emit_pipeline instead of full residency.
    in_specs = ([pl.BlockSpec((block_m, D), lambda i: (i, 0))] +
                [pl.BlockSpec(a.shape, _const_index_map(a.ndim)) for a in arg_list])
    out_specs = pl.BlockSpec((block_m, D), lambda i: (i, 0))

    kernel = functools.partial(
        _fused_transformer_kernel,
        n_layers=L, n_heads=n_heads, block_batch=block_batch, n_tokens=N,
        prenormalization=prenormalization, mm_dtype=mm_dtype,
        approx_softmax_recip=(mm_dtype == jnp.bfloat16))

    out = pl.pallas_call(
        kernel,
        out_shape=jax.ShapeDtypeStruct((M, D), jnp.float32),
        grid_spec=pltpu.PrefetchScalarGridSpec(
            num_scalar_prefetch=0,
            grid=grid,
            in_specs=in_specs,
            out_specs=out_specs,
            scratch_shapes=[pltpu.VMEM((block_m, D), mm_dtype)]),
        compiler_params=pltpu.CompilerParams(
            dimension_semantics=("parallel",),
            vmem_limit_bytes=_vmem_limit_bytes()),
    )(x2, *arg_list)
    return out.reshape(B, N, D)


# ---------------------------------------------------------------------------
# Deterministic parameter init (mirrors the module's __init__ shapes),
# stacked along a leading n_layers axis; weights pre-transposed to (in, out).
# ---------------------------------------------------------------------------
def init_params(key, n_layers, d_token, d_ffn_factor):
    d_hidden = int(d_token * d_ffn_factor)

    def linear(k, fan_in, fan_out, zero_bias=False):
        k1, k2 = jax.random.split(k)
        bound = 1.0 / math.sqrt(fan_in)
        w = jax.random.uniform(k1, (fan_in, fan_out), jnp.float32, -bound, bound)
        b = (jnp.zeros((1, fan_out), jnp.float32) if zero_bias else
             jax.random.uniform(k2, (1, fan_out), jnp.float32, -bound, bound))
        return w, b

    names = ['n0g', 'n0b', 'wq', 'bq', 'wk', 'bk', 'wv', 'bv', 'wo', 'bo',
             'n1g', 'n1b', 'w0', 'b0', 'w1', 'b1']
    per = {n: [] for n in names}
    for _ in range(n_layers):
        key, *ks = jax.random.split(key, 7)
        wq, bq = linear(ks[0], d_token, d_token, zero_bias=True)
        wk, bk = linear(ks[1], d_token, d_token, zero_bias=True)
        wv, bv = linear(ks[2], d_token, d_token, zero_bias=True)
        wo, bo = linear(ks[3], d_token, d_token, zero_bias=True)   # W_out
        w0, b0 = linear(ks[4], d_token, d_hidden)
        w1, b1 = linear(ks[5], d_hidden, d_token)
        vals = dict(
            n0g=jnp.ones((1, d_token), jnp.float32),
            n0b=jnp.zeros((1, d_token), jnp.float32),
            wq=wq, bq=bq, wk=wk, bk=bk, wv=wv, bv=bv, wo=wo, bo=bo,
            n1g=jnp.ones((1, d_token), jnp.float32),
            n1b=jnp.zeros((1, d_token), jnp.float32),
            w0=w0, b0=b0, w1=w1, b1=b1)
        for n in names:
            per[n].append(vals[n])
    return {n: jnp.stack(v, axis=0) for n, v in per.items()}


# ---------------------------------------------------------------------------
# Pure-JAX float32 reference of the PyTorch forward (for correctness checks).
# ---------------------------------------------------------------------------
def reference_forward(x, p, *, n_heads, prenormalization=True):
    hp = jax.lax.Precision.HIGHEST
    L = p['wq'].shape[0]
    D = x.shape[-1]
    dh = D // n_heads
    for l in range(L):
        xr = x
        if prenormalization and l > 0:
            xr = _layernorm(xr, p['n0g'][l], p['n0b'][l])
        q = jnp.matmul(xr, p['wq'][l], precision=hp) + p['bq'][l]
        k = jnp.matmul(xr, p['wk'][l], precision=hp) + p['bk'][l]
        v = jnp.matmul(xr, p['wv'][l], precision=hp) + p['bv'][l]
        outs = []
        for h in range(n_heads):
            hs = slice(h * dh, (h + 1) * dh)
            a = jnp.einsum('bqd,bkd->bqk', q[..., hs], k[..., hs],
                           precision=hp) / math.sqrt(dh)
            attn = jax.nn.softmax(a, axis=-1)
            outs.append(jnp.einsum('bqk,bkd->bqd', attn, v[..., hs], precision=hp))
        attn_out = jnp.concatenate(outs, axis=-1)
        if n_heads > 1:
            attn_out = jnp.matmul(attn_out, p['wo'][l], precision=hp) + p['bo'][l]
        x = x + attn_out
        if not prenormalization:
            x = _layernorm(x, p['n0g'][l], p['n0b'][l])
        xr = x
        if prenormalization:
            xr = _layernorm(xr, p['n1g'][l], p['n1b'][l])
        h0 = jnp.maximum(jnp.matmul(xr, p['w0'][l], precision=hp) + p['b0'][l], 0.0)
        x = x + jnp.matmul(h0, p['w1'][l], precision=hp) + p['b1'][l]
        if not prenormalization:
            x = _layernorm(x, p['n1g'][l], p['n1b'][l])
    return x


if __name__ == "__main__":
    # Small config consistent with the module: n_layers=2, d_token=32,
    # n_heads=2, d_ffn_factor=2, prenormalization=True, all dropouts=0.
    B, N, D = 2, 8, 32
    n_layers, n_heads, d_ffn_factor = 2, 2, 2

    key = jax.random.PRNGKey(0)
    kx, kp = jax.random.split(key)
    x = jax.random.normal(kx, (B, N, D), jnp.float32)
    params = init_params(kp, n_layers, D, d_ffn_factor)

    ref = reference_forward(x, params, n_heads=n_heads)

    # 1) f32 path, default block (single grid step).
    out_f32 = jax.block_until_ready(
        transformer_forward(x, params, n_heads=n_heads, mm_dtype=jnp.float32))
    assert out_f32.shape == (B, N, D)
    assert jnp.allclose(out_f32, ref, atol=1e-4, rtol=1e-4), \
        f"f32 path max abs diff {float(jnp.max(jnp.abs(out_f32 - ref)))}"

    # 2) f32 path, one batch element per block (2-step parallel grid).
    out_g = jax.block_until_ready(
        transformer_forward(x, params, n_heads=n_heads, mm_dtype=jnp.float32,
                            block_batch=1))
    assert jnp.allclose(out_g, ref, atol=1e-4, rtol=1e-4), \
        f"gridded f32 path max abs diff {float(jnp.max(jnp.abs(out_g - ref)))}"

    # 3) Performance path: bf16 MXU matmuls (f32 LayerNorm / softmax / residual).
    out_bf16 = jax.block_until_ready(
        transformer_forward(x, params, n_heads=n_heads, mm_dtype=jnp.bfloat16))
    assert jnp.allclose(out_bf16, ref, atol=5e-2, rtol=5e-2), \
        f"bf16 path max abs diff {float(jnp.max(jnp.abs(out_bf16 - ref)))}"

    # 4) Postnorm branch (prenormalization=False: LayerNorm after residuals).
    ref_pn = reference_forward(x, params, n_heads=n_heads, prenormalization=False)
    out_pn = jax.block_until_ready(
        transformer_forward(x, params, n_heads=n_heads, mm_dtype=jnp.float32,
                            prenormalization=False))
    assert jnp.allclose(out_pn, ref_pn, atol=1e-3, rtol=1e-3), \
        f"postnorm max abs diff {float(jnp.max(jnp.abs(out_pn - ref_pn)))}"

    # 5) n_heads == 1 (W_out is None in the PyTorch module).
    ref_h1 = reference_forward(x, params, n_heads=1)
    out_h1 = jax.block_until_ready(
        transformer_forward(x, params, n_heads=1, mm_dtype=jnp.float32))
    assert jnp.allclose(out_h1, ref_h1, atol=1e-3, rtol=1e-3), \
        f"n_heads=1 max abs diff {float(jnp.max(jnp.abs(out_h1 - ref_h1)))}"

    print("KERNEL_OK")
</pallas_src>

<mosaic_0001>
module attributes {stable_mosaic.version = 11 : i64} {
  func.func @_fused_transformer_kernel(%arg0: i32, %arg1: memref<16x32xf32, #tpu.memory_space<vmem>>, %arg2: memref<2x1x32xf32, #tpu.memory_space<vmem>>, %arg3: memref<2x1x32xf32, #tpu.memory_space<vmem>>, %arg4: memref<2x32x32xf32, #tpu.memory_space<vmem>>, %arg5: memref<2x1x32xf32, #tpu.memory_space<vmem>>, %arg6: memref<2x32x32xf32, #tpu.memory_space<vmem>>, %arg7: memref<2x1x32xf32, #tpu.memory_space<vmem>>, %arg8: memref<2x32x32xf32, #tpu.memory_space<vmem>>, %arg9: memref<2x1x32xf32, #tpu.memory_space<vmem>>, %arg10: memref<2x32x32xf32, #tpu.memory_space<vmem>>, %arg11: memref<2x1x32xf32, #tpu.memory_space<vmem>>, %arg12: memref<2x1x32xf32, #tpu.memory_space<vmem>>, %arg13: memref<2x1x32xf32, #tpu.memory_space<vmem>>, %arg14: memref<2x32x64xf32, #tpu.memory_space<vmem>>, %arg15: memref<2x1x64xf32, #tpu.memory_space<vmem>>, %arg16: memref<2x64x32xf32, #tpu.memory_space<vmem>>, %arg17: memref<2x1x32xf32, #tpu.memory_space<vmem>>, %arg18: memref<16x32xf32, #tpu.memory_space<vmem>>, %arg19: memref<16x32xf32, #tpu.memory_space<vmem>>) attributes {dimension_semantics = [#tpu.dimension_semantics<parallel>], iteration_bounds = array<i64: 1>, scalar_prefetch = 0 : i64, scratch_operands = 1 : i64, tpu.core_type = #tpu.core_type<tc>, window_params = [{transform_indices = @transform_0, window_bounds = array<i64: 16, 32>}, {pipeline_mode = #tpu.pipeline_mode<synchronous>, transform_indices = @transform_1, window_bounds = array<i64: 2, 1, 32>}, {pipeline_mode = #tpu.pipeline_mode<synchronous>, transform_indices = @transform_2, window_bounds = array<i64: 2, 1, 32>}, {pipeline_mode = #tpu.pipeline_mode<synchronous>, transform_indices = @transform_3, window_bounds = array<i64: 2, 32, 32>}, {pipeline_mode = #tpu.pipeline_mode<synchronous>, transform_indices = @transform_4, window_bounds = array<i64: 2, 1, 32>}, {pipeline_mode = #tpu.pipeline_mode<synchronous>, transform_indices = @transform_5, window_bounds = array<i64: 2, 32, 32>}, {pipeline_mode = #tpu.pipeline_mode<synchronous>, transform_indices = @transform_6, window_bounds = array<i64: 2, 1, 32>}, {pipeline_mode = #tpu.pipeline_mode<synchronous>, transform_indices = @transform_7, window_bounds = array<i64: 2, 32, 32>}, {pipeline_mode = #tpu.pipeline_mode<synchronous>, transform_indices = @transform_8, window_bounds = array<i64: 2, 1, 32>}, {pipeline_mode = #tpu.pipeline_mode<synchronous>, transform_indices = @transform_9, window_bounds = array<i64: 2, 32, 32>}, {pipeline_mode = #tpu.pipeline_mode<synchronous>, transform_indices = @transform_10, window_bounds = array<i64: 2, 1, 32>}, {pipeline_mode = #tpu.pipeline_mode<synchronous>, transform_indices = @transform_11, window_bounds = array<i64: 2, 1, 32>}, {pipeline_mode = #tpu.pipeline_mode<synchronous>, transform_indices = @transform_12, window_bounds = array<i64: 2, 1, 32>}, {pipeline_mode = #tpu.pipeline_mode<synchronous>, transform_indices = @transform_13, window_bounds = array<i64: 2, 32, 64>}, {pipeline_mode = #tpu.pipeline_mode<synchronous>, transform_indices = @transform_14, window_bounds = array<i64: 2, 1, 64>}, {pipeline_mode = #tpu.pipeline_mode<synchronous>, transform_indices = @transform_15, window_bounds = array<i64: 2, 64, 32>}, {pipeline_mode = #tpu.pipeline_mode<synchronous>, transform_indices = @transform_16, window_bounds = array<i64: 2, 1, 32>}, {transform_indices = @transform_17, window_bounds = array<i64: 16, 32>}]} {
    %c0 = arith.constant 0 : index
    %c0_0 = arith.constant 0 : index
    %0 = vector.load %arg1[%c0, %c0_0] : memref<16x32xf32, #tpu.memory_space<vmem>>, vector<16x32xf32>
    %c0_1 = arith.constant 0 : index
    %c0_2 = arith.constant 0 : index
    %c0_3 = arith.constant 0 : index
    %1 = vector.load %arg4[%c0_1, %c0_2, %c0_3] : memref<2x32x32xf32, #tpu.memory_space<vmem>>, vector<1x32x32xf32>
    %2 = vector.shape_cast %1 : vector<1x32x32xf32> to vector<32x32xf32>
    %cst = arith.constant dense<0.000000e+00> : vector<16x32xf32>
    %3 = tpu.matmul %0, %2, %cst {dimension_numbers = #tpu.dot_dimension_numbers<[1], [0], [0], [1], [0, 0, 1, 1], [], []>} : vector<16x32xf32>, vector<32x32xf32>, vector<16x32xf32> -> vector<16x32xf32>
    %c0_4 = arith.constant 0 : index
    %c0_5 = arith.constant 0 : index
    %c0_6 = arith.constant 0 : index
    %4 = vector.load %arg5[%c0_4, %c0_5, %c0_6] : memref<2x1x32xf32, #tpu.memory_space<vmem>>, vector<1x1x32xf32>
    %5 = vector.shape_cast %4 : vector<1x1x32xf32> to vector<1x32xf32>
    %6 = vector.broadcast %5 : vector<1x32xf32> to vector<16x32xf32>
    %7 = arith.addf %3, %6 : vector<16x32xf32>
    %c0_7 = arith.constant 0 : index
    %c0_8 = arith.constant 0 : index
    %c0_9 = arith.constant 0 : index
    %8 = vector.load %arg6[%c0_7, %c0_8, %c0_9] : memref<2x32x32xf32, #tpu.memory_space<vmem>>, vector<1x32x32xf32>
    %9 = vector.shape_cast %8 : vector<1x32x32xf32> to vector<32x32xf32>
    %cst_10 = arith.constant dense<0.000000e+00> : vector<16x32xf32>
    %10 = tpu.matmul %0, %9, %cst_10 {dimension_numbers = #tpu.dot_dimension_numbers<[1], [0], [0], [1], [0, 0, 1, 1], [], []>} : vector<16x32xf32>, vector<32x32xf32>, vector<16x32xf32> -> vector<16x32xf32>
    %c0_11 = arith.constant 0 : index
    %c0_12 = arith.constant 0 : index
    %c0_13 = arith.constant 0 : index
    %11 = vector.load %arg7[%c0_11, %c0_12, %c0_13] : memref<2x1x32xf32, #tpu.memory_space<vmem>>, vector<1x1x32xf32>
    %12 = vector.shape_cast %11 : vector<1x1x32xf32> to vector<1x32xf32>
    %13 = vector.broadcast %12 : vector<1x32xf32> to vector<16x32xf32>
    %14 = arith.addf %10, %13 : vector<16x32xf32>
    %c0_14 = arith.constant 0 : index
    %c0_15 = arith.constant 0 : index
    %c0_16 = arith.constant 0 : index
    %15 = vector.load %arg8[%c0_14, %c0_15, %c0_16] : memref<2x32x32xf32, #tpu.memory_space<vmem>>, vector<1x32x32xf32>
    %16 = vector.shape_cast %15 : vector<1x32x32xf32> to vector<32x32xf32>
    %cst_17 = arith.constant dense<0.000000e+00> : vector<16x32xf32>
    %17 = tpu.matmul %0, %16, %cst_17 {dimension_numbers = #tpu.dot_dimension_numbers<[1], [0], [0], [1], [0, 0, 1, 1], [], []>} : vector<16x32xf32>, vector<32x32xf32>, vector<16x32xf32> -> vector<16x32xf32>
    %c0_18 = arith.constant 0 : index
    %c0_19 = arith.constant 0 : index
    %c0_20 = arith.constant 0 : index
    %18 = vector.load %arg9[%c0_18, %c0_19, %c0_20] : memref<2x1x32xf32, #tpu.memory_space<vmem>>, vector<1x1x32xf32>
    %19 = vector.shape_cast %18 : vector<1x1x32xf32> to vector<1x32xf32>
    %20 = vector.broadcast %19 : vector<1x32xf32> to vector<16x32xf32>
    %21 = arith.addf %17, %20 : vector<16x32xf32>
    %22 = vector.shape_cast %7 : vector<16x32xf32> to vector<2x8x32xf32>
    %23 = vector.shape_cast %14 : vector<16x32xf32> to vector<2x8x32xf32>
    %24 = vector.shape_cast %21 : vector<16x32xf32> to vector<2x8x32xf32>
    %25 = vector.extract_strided_slice %22 {offsets = [0, 0, 0], sizes = [2, 8, 16], strides = [1, 1, 1]} : vector<2x8x32xf32> to vector<2x8x16xf32>
    %26 = vector.extract_strided_slice %23 {offsets = [0, 0, 0], sizes = [2, 8, 16], strides = [1, 1, 1]} : vector<2x8x32xf32> to vector<2x8x16xf32>
    "tpu.trace_start"() <{level = 10 : i32, message = "bqd,bkd->bqk"}> : () -> ()
    %cst_21 = arith.constant dense<0.000000e+00> : vector<2x8x8xf32>
    %27 = tpu.matmul %25, %26, %cst_21 {dimension_numbers = #tpu.dot_dimension_numbers<[2], [2], [1], [1], [0, 0, 0, 1, 1, 1], [0], [0]>} : vector<2x8x16xf32>, vector<2x8x16xf32>, vector<2x8x8xf32> -> vector<2x8x8xf32>
    "tpu.trace_stop"() : () -> ()
    %cst_22 = arith.constant dense<0xFF800000> : vector<2x8xf32>
    %28 = vector.multi_reduction <maximumf>, %27, %cst_22 [2] : vector<2x8x8xf32> to vector<2x8xf32>
    %29 = vector.shape_cast %28 : vector<2x8xf32> to vector<2x8x1xf32>
    %30 = vector.broadcast %29 : vector<2x8x1xf32> to vector<2x8x8xf32>
    %31 = arith.subf %27, %30 : vector<2x8x8xf32>
    %32 = math.exp %31 : vector<2x8x8xf32>
    %cst_23 = arith.constant dense<0.000000e+00> : vector<2x8xf32>
    %33 = vector.multi_reduction <add>, %32, %cst_23 [2] : vector<2x8x8xf32> to vector<2x8xf32>
    %34 = vector.shape_cast %33 : vector<2x8xf32> to vector<2x8x1xf32>
    %35 = vector.broadcast %34 : vector<2x8x1xf32> to vector<2x8x8xf32>
    %36 = arith.divf %32, %35 : vector<2x8x8xf32>
    %37 = vector.extract_strided_slice %24 {offsets = [0, 0, 0], sizes = [2, 8, 16], strides = [1, 1, 1]} : vector<2x8x32xf32> to vector<2x8x16xf32>
    "tpu.trace_start"() <{level = 10 : i32, message = "bqk,bkd->bqd"}> : () -> ()
    %cst_24 = arith.constant dense<0.000000e+00> : vector<2x8x16xf32>
    %38 = tpu.matmul %36, %37, %cst_24 {dimension_numbers = #tpu.dot_dimension_numbers<[2], [1], [1], [2], [0, 0, 0, 1, 1, 2], [0], [0]>} : vector<2x8x8xf32>, vector<2x8x16xf32>, vector<2x8x16xf32> -> vector<2x8x16xf32>
    "tpu.trace_stop"() : () -> ()
    %39 = vector.shape_cast %38 : vector<2x8x16xf32> to vector<16x16xf32>
    %c0_25 = arith.constant 0 : index
    %c0_26 = arith.constant 0 : index
    %40 = vector.load %arg19[%c0_25, %c0_26] : memref<16x32xf32, #tpu.memory_space<vmem>>, vector<16x16xf32>
    tpu.vector_store %arg19[%c0_25, %c0_26], %39 {strides = array<i32>} : memref<16x32xf32, #tpu.memory_space<vmem>>, vector<16x16xf32>,
    %41 = vector.extract_strided_slice %22 {offsets = [0, 0, 16], sizes = [2, 8, 16], strides = [1, 1, 1]} : vector<2x8x32xf32> to vector<2x8x16xf32>
    %42 = vector.extract_strided_slice %23 {offsets = [0, 0, 16], sizes = [2, 8, 16], strides = [1, 1, 1]} : vector<2x8x32xf32> to vector<2x8x16xf32>
    "tpu.trace_start"() <{level = 10 : i32, message = "bqd,bkd->bqk"}> : () -> ()
    %cst_27 = arith.constant dense<0.000000e+00> : vector<2x8x8xf32>
    %43 = tpu.matmul %41, %42, %cst_27 {dimension_numbers = #tpu.dot_dimension_numbers<[2], [2], [1], [1], [0, 0, 0, 1, 1, 1], [0], [0]>} : vector<2x8x16xf32>, vector<2x8x16xf32>, vector<2x8x8xf32> -> vector<2x8x8xf32>
    "tpu.trace_stop"() : () -> ()
    %cst_28 = arith.constant dense<0xFF800000> : vector<2x8xf32>
    %44 = vector.multi_reduction <maximumf>, %43, %cst_28 [2] : vector<2x8x8xf32> to vector<2x8xf32>
    %45 = vector.shape_cast %44 : vector<2x8xf32> to vector<2x8x1xf32>
    %46 = vector.broadcast %45 : vector<2x8x1xf32> to vector<2x8x8xf32>
    %47 = arith.subf %43, %46 : vector<2x8x8xf32>
    %48 = math.exp %47 : vector<2x8x8xf32>
    %cst_29 = arith.constant dense<0.000000e+00> : vector<2x8xf32>
    %49 = vector.multi_reduction <add>, %48, %cst_29 [2] : vector<2x8x8xf32> to vector<2x8xf32>
    %50 = vector.shape_cast %49 : vector<2x8xf32> to vector<2x8x1xf32>
    %51 = vector.broadcast %50 : vector<2x8x1xf32> to vector<2x8x8xf32>
    %52 = arith.divf %48, %51 : vector<2x8x8xf32>
    %53 = vector.extract_strided_slice %24 {offsets = [0, 0, 16], sizes = [2, 8, 16], strides = [1, 1, 1]} : vector<2x8x32xf32> to vector<2x8x16xf32>
    "tpu.trace_start"() <{level = 10 : i32, message = "bqk,bkd->bqd"}> : () -> ()
    %cst_30 = arith.constant dense<0.000000e+00> : vector<2x8x16xf32>
    %54 = tpu.matmul %52, %53, %cst_30 {dimension_numbers = #tpu.dot_dimension_numbers<[2], [1], [1], [2], [0, 0, 0, 1, 1, 2], [0], [0]>} : vector<2x8x8xf32>, vector<2x8x16xf32>, vector<2x8x16xf32> -> vector<2x8x16xf32>
    "tpu.trace_stop"() : () -> ()
    %55 = vector.shape_cast %54 : vector<2x8x16xf32> to vector<16x16xf32>
    %c0_31 = arith.constant 0 : index
    %c16 = arith.constant 16 : index
    %56 = vector.load %arg19[%c0_31, %c16] : memref<16x32xf32, #tpu.memory_space<vmem>>, vector<16x16xf32>
    tpu.vector_store %arg19[%c0_31, %c16], %55 {strides = array<i32>} : memref<16x32xf32, #tpu.memory_space<vmem>>, vector<16x16xf32>,
    %c0_32 = arith.constant 0 : index
    %c0_33 = arith.constant 0 : index
    %57 = vector.load %arg19[%c0_32, %c0_33] : memref<16x32xf32, #tpu.memory_space<vmem>>, vector<16x32xf32>
    %c0_34 = arith.constant 0 : index
    %c0_35 = arith.constant 0 : index
    %c0_36 = arith.constant 0 : index
    %58 = vector.load %arg10[%c0_34, %c0_35, %c0_36] : memref<2x32x32xf32, #tpu.memory_space<vmem>>, vector<1x32x32xf32>
    %59 = vector.shape_cast %58 : vector<1x32x32xf32> to vector<32x32xf32>
    %cst_37 = arith.constant dense<0.000000e+00> : vector<16x32xf32>
    %60 = tpu.matmul %57, %59, %cst_37 {dimension_numbers = #tpu.dot_dimension_numbers<[1], [0], [0], [1], [0, 0, 1, 1], [], []>} : vector<16x32xf32>, vector<32x32xf32>, vector<16x32xf32> -> vector<16x32xf32>
    %c0_38 = arith.constant 0 : index
    %c0_39 = arith.constant 0 : index
    %c0_40 = arith.constant 0 : index
    %61 = vector.load %arg11[%c0_38, %c0_39, %c0_40] : memref<2x1x32xf32, #tpu.memory_space<vmem>>, vector<1x1x32xf32>
    %62 = vector.shape_cast %61 : vector<1x1x32xf32> to vector<1x32xf32>
    %63 = vector.broadcast %62 : vector<1x32xf32> to vector<16x32xf32>
    %64 = arith.addf %60, %63 : vector<16x32xf32>
    %65 = arith.addf %0, %64 : vector<16x32xf32>
    %c0_41 = arith.constant 0 : index
    %c0_42 = arith.constant 0 : index
    %c0_43 = arith.constant 0 : index
    %66 = vector.load %arg12[%c0_41, %c0_42, %c0_43] : memref<2x1x32xf32, #tpu.memory_space<vmem>>, vector<1x1x32xf32>
    %67 = vector.shape_cast %66 : vector<1x1x32xf32> to vector<1x32xf32>
    %c0_44 = arith.constant 0 : index
    %c0_45 = arith.constant 0 : index
    %c0_46 = arith.constant 0 : index
    %68 = vector.load %arg13[%c0_44, %c0_45, %c0_46] : memref<2x1x32xf32, #tpu.memory_space<vmem>>, vector<1x1x32xf32>
    %69 = vector.shape_cast %68 : vector<1x1x32xf32> to vector<1x32xf32>
    %cst_47 = arith.constant dense<0.000000e+00> : vector<16xf32>
    %70 = vector.multi_reduction <add>, %65, %cst_47 [1] : vector<16x32xf32> to vector<16xf32>
    %71 = vector.shape_cast %70 : vector<16xf32> to vector<16x1xf32>
    %cst_48 = arith.constant 3.200000e+01 : f32
    %72 = vector.broadcast %cst_48 : f32 to vector<16x1xf32>
    %73 = arith.divf %71, %72 : vector<16x1xf32>
    %74 = vector.broadcast %73 : vector<16x1xf32> to vector<16x32xf32>
    %75 = arith.subf %65, %74 : vector<16x32xf32>
    %76 = arith.mulf %75, %75 : vector<16x32xf32>
    %cst_49 = arith.constant dense<0.000000e+00> : vector<16xf32>
    %77 = vector.multi_reduction <add>, %76, %cst_49 [1] : vector<16x32xf32> to vector<16xf32>
    %78 = vector.shape_cast %77 : vector<16xf32> to vector<16x1xf32>
    %cst_50 = arith.constant 3.200000e+01 : f32
    %79 = vector.broadcast %cst_50 : f32 to vector<16x1xf32>
    %80 = arith.divf %78, %79 : vector<16x1xf32>
    %81 = vector.broadcast %73 : vector<16x1xf32> to vector<16x32xf32>
    %82 = arith.subf %65, %81 : vector<16x32xf32>
    %cst_51 = arith.constant 9.99999974E-6 : f32
    %83 = vector.broadcast %cst_51 : f32 to vector<16x1xf32>
    %84 = arith.addf %80, %83 : vector<16x1xf32>
    %85 = math.rsqrt %84 : vector<16x1xf32>
    %86 = vector.broadcast %85 : vector<16x1xf32> to vector<16x32xf32>
    %87 = arith.mulf %82, %86 : vector<16x32xf32>
    %88 = vector.broadcast %67 : vector<1x32xf32> to vector<16x32xf32>
    %89 = arith.mulf %87, %88 : vector<16x32xf32>
    %90 = vector.broadcast %69 : vector<1x32xf32> to vector<16x32xf32>
    %91 = arith.addf %89, %90 : vector<16x32xf32>
    %c0_52 = arith.constant 0 : index
    %c0_53 = arith.constant 0 : index
    %c0_54 = arith.constant 0 : index
    %92 = vector.load %arg14[%c0_52, %c0_53, %c0_54] : memref<2x32x64xf32, #tpu.memory_space<vmem>>, vector<1x32x64xf32>
    %93 = vector.shape_cast %92 : vector<1x32x64xf32> to vector<32x64xf32>
    %cst_55 = arith.constant dense<0.000000e+00> : vector<16x64xf32>
    %94 = tpu.matmul %91, %93, %cst_55 {dimension_numbers = #tpu.dot_dimension_numbers<[1], [0], [0], [1], [0, 0, 1, 1], [], []>} : vector<16x32xf32>, vector<32x64xf32>, vector<16x64xf32> -> vector<16x64xf32>
    %c0_56 = arith.constant 0 : index
    %c0_57 = arith.constant 0 : index
    %c0_58 = arith.constant 0 : index
    %95 = vector.load %arg15[%c0_56, %c0_57, %c0_58] : memref<2x1x64xf32, #tpu.memory_space<vmem>>, vector<1x1x64xf32>
    %96 = vector.shape_cast %95 : vector<1x1x64xf32> to vector<1x64xf32>
    %97 = vector.broadcast %96 : vector<1x64xf32> to vector<16x64xf32>
    %98 = arith.addf %94, %97 : vector<16x64xf32>
    %cst_59 = arith.constant 0.000000e+00 : f32
    %99 = vector.broadcast %cst_59 : f32 to vector<16x64xf32>
    %100 = arith.maximumf %98, %99 : vector<16x64xf32>
    %c0_60 = arith.constant 0 : index
    %c0_61 = arith.constant 0 : index
    %c0_62 = arith.constant 0 : index
    %101 = vector.load %arg16[%c0_60, %c0_61, %c0_62] : memref<2x64x32xf32, #tpu.memory_space<vmem>>, vector<1x64x32xf32>
    %102 = vector.shape_cast %101 : vector<1x64x32xf32> to vector<64x32xf32>
    %cst_63 = arith.constant dense<0.000000e+00> : vector<16x32xf32>
    %103 = tpu.matmul %100, %102, %cst_63 {dimension_numbers = #tpu.dot_dimension_numbers<[1], [0], [0], [1], [0, 0, 1, 1], [], []>} : vector<16x64xf32>, vector<64x32xf32>, vector<16x32xf32> -> vector<16x32xf32>
    %104 = arith.addf %65, %103 : vector<16x32xf32>
    %c0_64 = arith.constant 0 : index
    %c0_65 = arith.constant 0 : index
    %c0_66 = arith.constant 0 : index
    %105 = vector.load %arg17[%c0_64, %c0_65, %c0_66] : memref<2x1x32xf32, #tpu.memory_space<vmem>>, vector<1x1x32xf32>
    %106 = vector.shape_cast %105 : vector<1x1x32xf32> to vector<1x32xf32>
    %107 = vector.broadcast %106 : vector<1x32xf32> to vector<16x32xf32>
    %108 = arith.addf %104, %107 : vector<16x32xf32>
    %c1 = arith.constant 1 : index
    %c0_67 = arith.constant 0 : index
    %c0_68 = arith.constant 0 : index
    %109 = vector.load %arg2[%c1, %c0_67, %c0_68] : memref<2x1x32xf32, #tpu.memory_space<vmem>>, vector<1x1x32xf32>
    %110 = vector.shape_cast %109 : vector<1x1x32xf32> to vector<1x32xf32>
    %c1_69 = arith.constant 1 : index
    %c0_70 = arith.constant 0 : index
    %c0_71 = arith.constant 0 : index
    %111 = vector.load %arg3[%c1_69, %c0_70, %c0_71] : memref<2x1x32xf32, #tpu.memory_space<vmem>>, vector<1x1x32xf32>
    %112 = vector.shape_cast %111 : vector<1x1x32xf32> to vector<1x32xf32>
    %cst_72 = arith.constant dense<0.000000e+00> : vector<16xf32>
    %113 = vector.multi_reduction <add>, %108, %cst_72 [1] : vector<16x32xf32> to vector<16xf32>
    %114 = vector.shape_cast %113 : vector<16xf32> to vector<16x1xf32>
    %cst_73 = arith.constant 3.200000e+01 : f32
    %115 = vector.broadcast %cst_73 : f32 to vector<16x1xf32>
    %116 = arith.divf %114, %115 : vector<16x1xf32>
    %117 = vector.broadcast %116 : vector<16x1xf32> to vector<16x32xf32>
    %118 = arith.subf %108, %117 : vector<16x32xf32>
    %119 = arith.mulf %118, %118 : vector<16x32xf32>
    %cst_74 = arith.constant dense<0.000000e+00> : vector<16xf32>
    %120 = vector.multi_reduction <add>, %119, %cst_74 [1] : vector<16x32xf32> to vector<16xf32>
    %121 = vector.shape_cast %120 : vector<16xf32> to vector<16x1xf32>
    %cst_75 = arith.constant 3.200000e+01 : f32
    %122 = vector.broadcast %cst_75 : f32 to vector<16x1xf32>
    %123 = arith.divf %121, %122 : vector<16x1xf32>
    %124 = vector.broadcast %116 : vector<16x1xf32> to vector<16x32xf32>
    %125 = arith.subf %108, %124 : vector<16x32xf32>
    %cst_76 = arith.constant 9.99999974E-6 : f32
    %126 = vector.broadcast %cst_76 : f32 to vector<16x1xf32>
    %127 = arith.addf %123, %126 : vector<16x1xf32>
    %128 = math.rsqrt %127 : vector<16x1xf32>
    %129 = vector.broadcast %128 : vector<16x1xf32> to vector<16x32xf32>
    %130 = arith.mulf %125, %129 : vector<16x32xf32>
    %131 = vector.broadcast %110 : vector<1x32xf32> to vector<16x32xf32>
    %132 = arith.mulf %130, %131 : vector<16x32xf32>
    %133 = vector.broadcast %112 : vector<1x32xf32> to vector<16x32xf32>
    %134 = arith.addf %132, %133 : vector<16x32xf32>
    %c1_77 = arith.constant 1 : index
    %c0_78 = arith.constant 0 : index
    %c0_79 = arith.constant 0 : index
    %135 = vector.load %arg4[%c1_77, %c0_78, %c0_79] : memref<2x32x32xf32, #tpu.memory_space<vmem>>, vector<1x32x32xf32>
    %136 = vector.shape_cast %135 : vector<1x32x32xf32> to vector<32x32xf32>
    %cst_80 = arith.constant dense<0.000000e+00> : vector<16x32xf32>
    %137 = tpu.matmul %134, %136, %cst_80 {dimension_numbers = #tpu.dot_dimension_numbers<[1], [0], [0], [1], [0, 0, 1, 1], [], []>} : vector<16x32xf32>, vector<32x32xf32>, vector<16x32xf32> -> vector<16x32xf32>
    %c1_81 = arith.constant 1 : index
    %c0_82 = arith.constant 0 : index
    %c0_83 = arith.constant 0 : index
    %138 = vector.load %arg5[%c1_81, %c0_82, %c0_83] : memref<2x1x32xf32, #tpu.memory_space<vmem>>, vector<1x1x32xf32>
    %139 = vector.shape_cast %138 : vector<1x1x32xf32> to vector<1x32xf32>
    %140 = vector.broadcast %139 : vector<1x32xf32> to vector<16x32xf32>
    %141 = arith.addf %137, %140 : vector<16x32xf32>
    %c1_84 = arith.constant 1 : index
    %c0_85 = arith.constant 0 : index
    %c0_86 = arith.constant 0 : index
    %142 = vector.load %arg6[%c1_84, %c0_85, %c0_86] : memref<2x32x32xf32, #tpu.memory_space<vmem>>, vector<1x32x32xf32>
    %143 = vector.shape_cast %142 : vector<1x32x32xf32> to vector<32x32xf32>
    %cst_87 = arith.constant dense<0.000000e+00> : vector<16x32xf32>
    %144 = tpu.matmul %134, %143, %cst_87 {dimension_numbers = #tpu.dot_dimension_numbers<[1], [0], [0], [1], [0, 0, 1, 1], [], []>} : vector<16x32xf32>, vector<32x32xf32>, vector<16x32xf32> -> vector<16x32xf32>
    %c1_88 = arith.constant 1 : index
    %c0_89 = arith.constant 0 : index
    %c0_90 = arith.constant 0 : index
    %145 = vector.load %arg7[%c1_88, %c0_89, %c0_90] : memref<2x1x32xf32, #tpu.memory_space<vmem>>, vector<1x1x32xf32>
    %146 = vector.shape_cast %145 : vector<1x1x32xf32> to vector<1x32xf32>
    %147 = vector.broadcast %146 : vector<1x32xf32> to vector<16x32xf32>
    %148 = arith.addf %144, %147 : vector<16x32xf32>
    %c1_91 = arith.constant 1 : index
    %c0_92 = arith.constant 0 : index
    %c0_93 = arith.constant 0 : index
    %149 = vector.load %arg8[%c1_91, %c0_92, %c0_93] : memref<2x32x32xf32, #tpu.memory_space<vmem>>, vector<1x32x32xf32>
    %150 = vector.shape_cast %149 : vector<1x32x32xf32> to vector<32x32xf32>
    %cst_94 = arith.constant dense<0.000000e+00> : vector<16x32xf32>
    %151 = tpu.matmul %134, %150, %cst_94 {dimension_numbers = #tpu.dot_dimension_numbers<[1], [0], [0], [1], [0, 0, 1, 1], [], []>} : vector<16x32xf32>, vector<32x32xf32>, vector<16x32xf32> -> vector<16x32xf32>
    %c1_95 = arith.constant 1 : index
    %c0_96 = arith.constant 0 : index
    %c0_97 = arith.constant 0 : index
    %152 = vector.load %arg9[%c1_95, %c0_96, %c0_97] : memref<2x1x32xf32, #tpu.memory_space<vmem>>, vector<1x1x32xf32>
    %153 = vector.shape_cast %152 : vector<1x1x32xf32> to vector<1x32xf32>
    %154 = vector.broadcast %153 : vector<1x32xf32> to vector<16x32xf32>
    %155 = arith.addf %151, %154 : vector<16x32xf32>
    %156 = vector.shape_cast %141 : vector<16x32xf32> to vector<2x8x32xf32>
    %157 = vector.shape_cast %148 : vector<16x32xf32> to vector<2x8x32xf32>
    %158 = vector.shape_cast %155 : vector<16x32xf32> to vector<2x8x32xf32>
    %159 = vector.extract_strided_slice %156 {offsets = [0, 0, 0], sizes = [2, 8, 16], strides = [1, 1, 1]} : vector<2x8x32xf32> to vector<2x8x16xf32>
    %160 = vector.extract_strided_slice %157 {offsets = [0, 0, 0], sizes = [2, 8, 16], strides = [1, 1, 1]} : vector<2x8x32xf32> to vector<2x8x16xf32>
    "tpu.trace_start"() <{level = 10 : i32, message = "bqd,bkd->bqk"}> : () -> ()
    %cst_98 = arith.constant dense<0.000000e+00> : vector<2x8x8xf32>
    %161 = tpu.matmul %159, %160, %cst_98 {dimension_numbers = #tpu.dot_dimension_numbers<[2], [2], [1], [1], [0, 0, 0, 1, 1, 1], [0], [0]>} : vector<2x8x16xf32>, vector<2x8x16xf32>, vector<2x8x8xf32> -> vector<2x8x8xf32>
    "tpu.trace_stop"() : () -> ()
    %cst_99 = arith.constant dense<0xFF800000> : vector<2x8xf32>
    %162 = vector.multi_reduction <maximumf>, %161, %cst_99 [2] : vector<2x8x8xf32> to vector<2x8xf32>
    %163 = vector.shape_cast %162 : vector<2x8xf32> to vector<2x8x1xf32>
    %164 = vector.broadcast %163 : vector<2x8x1xf32> to vector<2x8x8xf32>
    %165 = arith.subf %161, %164 : vector<2x8x8xf32>
    %166 = math.exp %165 : vector<2x8x8xf32>
    %cst_100 = arith.constant dense<0.000000e+00> : vector<2x8xf32>
    %167 = vector.multi_reduction <add>, %166, %cst_100 [2] : vector<2x8x8xf32> to vector<2x8xf32>
    %168 = vector.shape_cast %167 : vector<2x8xf32> to vector<2x8x1xf32>
    %169 = vector.broadcast %168 : vector<2x8x1xf32> to vector<2x8x8xf32>
    %170 = arith.divf %166, %169 : vector<2x8x8xf32>
    %171 = vector.extract_strided_slice %158 {offsets = [0, 0, 0], sizes = [2, 8, 16], strides = [1, 1, 1]} : vector<2x8x32xf32> to vector<2x8x16xf32>
    "tpu.trace_start"() <{level = 10 : i32, message = "bqk,bkd->bqd"}> : () -> ()
    %cst_101 = arith.constant dense<0.000000e+00> : vector<2x8x16xf32>
    %172 = tpu.matmul %170, %171, %cst_101 {dimension_numbers = #tpu.dot_dimension_numbers<[2], [1], [1], [2], [0, 0, 0, 1, 1, 2], [0], [0]>} : vector<2x8x8xf32>, vector<2x8x16xf32>, vector<2x8x16xf32> -> vector<2x8x16xf32>
    "tpu.trace_stop"() : () -> ()
    %173 = vector.shape_cast %172 : vector<2x8x16xf32> to vector<16x16xf32>
    %c0_102 = arith.constant 0 : index
    %c0_103 = arith.constant 0 : index
    %174 = vector.load %arg19[%c0_102, %c0_103] : memref<16x32xf32, #tpu.memory_space<vmem>>, vector<16x16xf32>
    tpu.vector_store %arg19[%c0_102, %c0_103], %173 {strides = array<i32>} : memref<16x32xf32, #tpu.memory_space<vmem>>, vector<16x16xf32>,
    %175 = vector.extract_strided_slice %156 {offsets = [0, 0, 16], sizes = [2, 8, 16], strides = [1, 1, 1]} : vector<2x8x32xf32> to vector<2x8x16xf32>
    %176 = vector.extract_strided_slice %157 {offsets = [0, 0, 16], sizes = [2, 8, 16], strides = [1, 1, 1]} : vector<2x8x32xf32> to vector<2x8x16xf32>
    "tpu.trace_start"() <{level = 10 : i32, message = "bqd,bkd->bqk"}> : () -> ()
    %cst_104 = arith.constant dense<0.000000e+00> : vector<2x8x8xf32>
    %177 = tpu.matmul %175, %176, %cst_104 {dimension_numbers = #tpu.dot_dimension_numbers<[2], [2], [1], [1], [0, 0, 0, 1, 1, 1], [0], [0]>} : vector<2x8x16xf32>, vector<2x8x16xf32>, vector<2x8x8xf32> -> vector<2x8x8xf32>
    "tpu.trace_stop"() : () -> ()
    %cst_105 = arith.constant dense<0xFF800000> : vector<2x8xf32>
    %178 = vector.multi_reduction <maximumf>, %177, %cst_105 [2] : vector<2x8x8xf32> to vector<2x8xf32>
    %179 = vector.shape_cast %178 : vector<2x8xf32> to vector<2x8x1xf32>
    %180 = vector.broadcast %179 : vector<2x8x1xf32> to vector<2x8x8xf32>
    %181 = arith.subf %177, %180 : vector<2x8x8xf32>
    %182 = math.exp %181 : vector<2x8x8xf32>
    %cst_106 = arith.constant dense<0.000000e+00> : vector<2x8xf32>
    %183 = vector.multi_reduction <add>, %182, %cst_106 [2] : vector<2x8x8xf32> to vector<2x8xf32>
    %184 = vector.shape_cast %183 : vector<2x8xf32> to vector<2x8x1xf32>
    %185 = vector.broadcast %184 : vector<2x8x1xf32> to vector<2x8x8xf32>
    %186 = arith.divf %182, %185 : vector<2x8x8xf32>
    %187 = vector.extract_strided_slice %158 {offsets = [0, 0, 16], sizes = [2, 8, 16], strides = [1, 1, 1]} : vector<2x8x32xf32> to vector<2x8x16xf32>
    "tpu.trace_start"() <{level = 10 : i32, message = "bqk,bkd->bqd"}> : () -> ()
    %cst_107 = arith.constant dense<0.000000e+00> : vector<2x8x16xf32>
    %188 = tpu.matmul %186, %187, %cst_107 {dimension_numbers = #tpu.dot_dimension_numbers<[2], [1], [1], [2], [0, 0, 0, 1, 1, 2], [0], [0]>} : vector<2x8x8xf32>, vector<2x8x16xf32>, vector<2x8x16xf32> -> vector<2x8x16xf32>
    "tpu.trace_stop"() : () -> ()
    %189 = vector.shape_cast %188 : vector<2x8x16xf32> to vector<16x16xf32>
    %c0_108 = arith.constant 0 : index
    %c16_109 = arith.constant 16 : index
    %190 = vector.load %arg19[%c0_108, %c16_109] : memref<16x32xf32, #tpu.memory_space<vmem>>, vector<16x16xf32>
    tpu.vector_store %arg19[%c0_108, %c16_109], %189 {strides = array<i32>} : memref<16x32xf32, #tpu.memory_space<vmem>>, vector<16x16xf32>,
    %c0_110 = arith.constant 0 : index
    %c0_111 = arith.constant 0 : index
    %191 = vector.load %arg19[%c0_110, %c0_111] : memref<16x32xf32, #tpu.memory_space<vmem>>, vector<16x32xf32>
    %c1_112 = arith.constant 1 : index
    %c0_113 = arith.constant 0 : index
    %c0_114 = arith.constant 0 : index
    %192 = vector.load %arg10[%c1_112, %c0_113, %c0_114] : memref<2x32x32xf32, #tpu.memory_space<vmem>>, vector<1x32x32xf32>
    %193 = vector.shape_cast %192 : vector<1x32x32xf32> to vector<32x32xf32>
    %cst_115 = arith.constant dense<0.000000e+00> : vector<16x32xf32>
    %194 = tpu.matmul %191, %193, %cst_115 {dimension_numbers = #tpu.dot_dimension_numbers<[1], [0], [0], [1], [0, 0, 1, 1], [], []>} : vector<16x32xf32>, vector<32x32xf32>, vector<16x32xf32> -> vector<16x32xf32>
    %c1_116 = arith.constant 1 : index
    %c0_117 = arith.constant 0 : index
    %c0_118 = arith.constant 0 : index
    %195 = vector.load %arg11[%c1_116, %c0_117, %c0_118] : memref<2x1x32xf32, #tpu.memory_space<vmem>>, vector<1x1x32xf32>
    %196 = vector.shape_cast %195 : vector<1x1x32xf32> to vector<1x32xf32>
    %197 = vector.broadcast %196 : vector<1x32xf32> to vector<16x32xf32>
    %198 = arith.addf %194, %197 : vector<16x32xf32>
    %199 = arith.addf %108, %198 : vector<16x32xf32>
    %c1_119 = arith.constant 1 : index
    %c0_120 = arith.constant 0 : index
    %c0_121 = arith.constant 0 : index
    %200 = vector.load %arg12[%c1_119, %c0_120, %c0_121] : memref<2x1x32xf32, #tpu.memory_space<vmem>>, vector<1x1x32xf32>
    %201 = vector.shape_cast %200 : vector<1x1x32xf32> to vector<1x32xf32>
    %c1_122 = arith.constant 1 : index
    %c0_123 = arith.constant 0 : index
    %c0_124 = arith.constant 0 : index
    %202 = vector.load %arg13[%c1_122, %c0_123, %c0_124] : memref<2x1x32xf32, #tpu.memory_space<vmem>>, vector<1x1x32xf32>
    %203 = vector.shape_cast %202 : vector<1x1x32xf32> to vector<1x32xf32>
    %cst_125 = arith.constant dense<0.000000e+00> : vector<16xf32>
    %204 = vector.multi_reduction <add>, %199, %cst_125 [1] : vector<16x32xf32> to vector<16xf32>
    %205 = vector.shape_cast %204 : vector<16xf32> to vector<16x1xf32>
    %cst_126 = arith.constant 3.200000e+01 : f32
    %206 = vector.broadcast %cst_126 : f32 to vector<16x1xf32>
    %207 = arith.divf %205, %206 : vector<16x1xf32>
    %208 = vector.broadcast %207 : vector<16x1xf32> to vector<16x32xf32>
    %209 = arith.subf %199, %208 : vector<16x32xf32>
    %210 = arith.mulf %209, %209 : vector<16x32xf32>
    %cst_127 = arith.constant dense<0.000000e+00> : vector<16xf32>
    %211 = vector.multi_reduction <add>, %210, %cst_127 [1] : vector<16x32xf32> to vector<16xf32>
    %212 = vector.shape_cast %211 : vector<16xf32> to vector<16x1xf32>
    %cst_128 = arith.constant 3.200000e+01 : f32
    %213 = vector.broadcast %cst_128 : f32 to vector<16x1xf32>
    %214 = arith.divf %212, %213 : vector<16x1xf32>
    %215 = vector.broadcast %207 : vector<16x1xf32> to vector<16x32xf32>
    %216 = arith.subf %199, %215 : vector<16x32xf32>
    %cst_129 = arith.constant 9.99999974E-6 : f32
    %217 = vector.broadcast %cst_129 : f32 to vector<16x1xf32>
    %218 = arith.addf %214, %217 : vector<16x1xf32>
    %219 = math.rsqrt %218 : vector<16x1xf32>
    %220 = vector.broadcast %219 : vector<16x1xf32> to vector<16x32xf32>
    %221 = arith.mulf %216, %220 : vector<16x32xf32>
    %222 = vector.broadcast %201 : vector<1x32xf32> to vector<16x32xf32>
    %223 = arith.mulf %221, %222 : vector<16x32xf32>
    %224 = vector.broadcast %203 : vector<1x32xf32> to vector<16x32xf32>
    %225 = arith.addf %223, %224 : vector<16x32xf32>
    %c1_130 = arith.constant 1 : index
    %c0_131 = arith.constant 0 : index
    %c0_132 = arith.constant 0 : index
    %226 = vector.load %arg14[%c1_130, %c0_131, %c0_132] : memref<2x32x64xf32, #tpu.memory_space<vmem>>, vector<1x32x64xf32>
    %227 = vector.shape_cast %226 : vector<1x32x64xf32> to vector<32x64xf32>
    %cst_133 = arith.constant dense<0.000000e+00> : vector<16x64xf32>
    %228 = tpu.matmul %225, %227, %cst_133 {dimension_numbers = #tpu.dot_dimension_numbers<[1], [0], [0], [1], [0, 0, 1, 1], [], []>} : vector<16x32xf32>, vector<32x64xf32>, vector<16x64xf32> -> vector<16x64xf32>
    %c1_134 = arith.constant 1 : index
    %c0_135 = arith.constant 0 : index
    %c0_136 = arith.constant 0 : index
    %229 = vector.load %arg15[%c1_134, %c0_135, %c0_136] : memref<2x1x64xf32, #tpu.memory_space<vmem>>, vector<1x1x64xf32>
    %230 = vector.shape_cast %229 : vector<1x1x64xf32> to vector<1x64xf32>
    %231 = vector.broadcast %230 : vector<1x64xf32> to vector<16x64xf32>
    %232 = arith.addf %228, %231 : vector<16x64xf32>
    %cst_137 = arith.constant 0.000000e+00 : f32
    %233 = vector.broadcast %cst_137 : f32 to vector<16x64xf32>
    %234 = arith.maximumf %232, %233 : vector<16x64xf32>
    %c1_138 = arith.constant 1 : index
    %c0_139 = arith.constant 0 : index
    %c0_140 = arith.constant 0 : index
    %235 = vector.load %arg16[%c1_138, %c0_139, %c0_140] : memref<2x64x32xf32, #tpu.memory_space<vmem>>, vector<1x64x32xf32>
    %236 = vector.shape_cast %235 : vector<1x64x32xf32> to vector<64x32xf32>
    %cst_141 = arith.constant dense<0.000000e+00> : vector<16x32xf32>
    %237 = tpu.matmul %234, %236, %cst_141 {dimension_numbers = #tpu.dot_dimension_numbers<[1], [0], [0], [1], [0, 0, 1, 1], [], []>} : vector<16x64xf32>, vector<64x32xf32>, vector<16x32xf32> -> vector<16x32xf32>
    %238 = arith.addf %199, %237 : vector<16x32xf32>
    %c1_142 = arith.constant 1 : index
    %c0_143 = arith.constant 0 : index
    %c0_144 = arith.constant 0 : index
    %239 = vector.load %arg17[%c1_142, %c0_143, %c0_144] : memref<2x1x32xf32, #tpu.memory_space<vmem>>, vector<1x1x32xf32>
    %240 = vector.shape_cast %239 : vector<1x1x32xf32> to vector<1x32xf32>
    %241 = vector.broadcast %240 : vector<1x32xf32> to vector<16x32xf32>
    %242 = arith.addf %238, %241 : vector<16x32xf32>
    %c0_145 = arith.constant 0 : index
    %c0_146 = arith.constant 0 : index
    %243 = vector.load %arg18[%c0_145, %c0_146] : memref<16x32xf32, #tpu.memory_space<vmem>>, vector<16x32xf32>
    tpu.vector_store %arg18[%c0_145, %c0_146], %242 {strides = array<i32>} : memref<16x32xf32, #tpu.memory_space<vmem>>, vector<16x32xf32>,
    return
  }
  func.func @transform_0(%arg0: i32) -> (i32, i32) {
    %c0_i32 = arith.constant 0 : i32
    %c0_i32_0 = arith.constant 0 : i32
    return %arg0, %c0_i32 : i32, i32
  }
  func.func @transform_1(%arg0: i32) -> (i32, i32, i32) {
    %c0_i32 = arith.constant 0 : i32
    %c0_i32_0 = arith.constant 0 : i32
    %c0_i32_1 = arith.constant 0 : i32
    %c0_i32_2 = arith.constant 0 : i32
    return %c0_i32, %c0_i32_0, %c0_i32_1 : i32, i32, i32
  }
  func.func @transform_2(%arg0: i32) -> (i32, i32, i32) {
    %c0_i32 = arith.constant 0 : i32
    %c0_i32_0 = arith.constant 0 : i32
    %c0_i32_1 = arith.constant 0 : i32
    %c0_i32_2 = arith.constant 0 : i32
    return %c0_i32, %c0_i32_0, %c0_i32_1 : i32, i32, i32
  }
  func.func @transform_3(%arg0: i32) -> (i32, i32, i32) {
    %c0_i32 = arith.constant 0 : i32
    %c0_i32_0 = arith.constant 0 : i32
    %c0_i32_1 = arith.constant 0 : i32
    %c0_i32_2 = arith.constant 0 : i32
    return %c0_i32, %c0_i32_0, %c0_i32_1 : i32, i32, i32
  }
  func.func @transform_4(%arg0: i32) -> (i32, i32, i32) {
    %c0_i32 = arith.constant 0 : i32
    %c0_i32_0 = arith.constant 0 : i32
    %c0_i32_1 = arith.constant 0 : i32
    %c0_i32_2 = arith.constant 0 : i32
    return %c0_i32, %c0_i32_0, %c0_i32_1 : i32, i32, i32
  }
  func.func @transform_5(%arg0: i32) -> (i32, i32, i32) {
    %c0_i32 = arith.constant 0 : i32
    %c0_i32_0 = arith.constant 0 : i32
    %c0_i32_1 = arith.constant 0 : i32
    %c0_i32_2 = arith.constant 0 : i32
    return %c0_i32, %c0_i32_0, %c0_i32_1 : i32, i32, i32
  }
  func.func @transform_6(%arg0: i32) -> (i32, i32, i32) {
    %c0_i32 = arith.constant 0 : i32
    %c0_i32_0 = arith.constant 0 : i32
    %c0_i32_1 = arith.constant 0 : i32
    %c0_i32_2 = arith.constant 0 : i32
    return %c0_i32, %c0_i32_0, %c0_i32_1 : i32, i32, i32
  }
  func.func @transform_7(%arg0: i32) -> (i32, i32, i32) {
    %c0_i32 = arith.constant 0 : i32
    %c0_i32_0 = arith.constant 0 : i32
    %c0_i32_1 = arith.constant 0 : i32
    %c0_i32_2 = arith.constant 0 : i32
    return %c0_i32, %c0_i32_0, %c0_i32_1 : i32, i32, i32
  }
  func.func @transform_8(%arg0: i32) -> (i32, i32, i32) {
    %c0_i32 = arith.constant 0 : i32
    %c0_i32_0 = arith.constant 0 : i32
    %c0_i32_1 = arith.constant 0 : i32
    %c0_i32_2 = arith.constant 0 : i32
    return %c0_i32, %c0_i32_0, %c0_i32_1 : i32, i32, i32
  }
  func.func @transform_9(%arg0: i32) -> (i32, i32, i32) {
    %c0_i32 = arith.constant 0 : i32
    %c0_i32_0 = arith.constant 0 : i32
    %c0_i32_1 = arith.constant 0 : i32
    %c0_i32_2 = arith.constant 0 : i32
    return %c0_i32, %c0_i32_0, %c0_i32_1 : i32, i32, i32
  }
  func.func @transform_10(%arg0: i32) -> (i32, i32, i32) {
    %c0_i32 = arith.constant 0 : i32
    %c0_i32_0 = arith.constant 0 : i32
    %c0_i32_1 = arith.constant 0 : i32
    %c0_i32_2 = arith.constant 0 : i32
    return %c0_i32, %c0_i32_0, %c0_i32_1 : i32, i32, i32
  }
  func.func @transform_11(%arg0: i32) -> (i32, i32, i32) {
    %c0_i32 = arith.constant 0 : i32
    %c0_i32_0 = arith.constant 0 : i32
    %c0_i32_1 = arith.constant 0 : i32
    %c0_i32_2 = arith.constant 0 : i32
    return %c0_i32, %c0_i32_0, %c0_i32_1 : i32, i32, i32
  }
  func.func @transform_12(%arg0: i32) -> (i32, i32, i32) {
    %c0_i32 = arith.constant 0 : i32
    %c0_i32_0 = arith.constant 0 : i32
    %c0_i32_1 = arith.constant 0 : i32
    %c0_i32_2 = arith.constant 0 : i32
    return %c0_i32, %c0_i32_0, %c0_i32_1 : i32, i32, i32
  }
  func.func @transform_13(%arg0: i32) -> (i32, i32, i32) {
    %c0_i32 = arith.constant 0 : i32
    %c0_i32_0 = arith.constant 0 : i32
    %c0_i32_1 = arith.constant 0 : i32
    %c0_i32_2 = arith.constant 0 : i32
    return %c0_i32, %c0_i32_0, %c0_i32_1 : i32, i32, i32
  }
  func.func @transform_14(%arg0: i32) -> (i32, i32, i32) {
    %c0_i32 = arith.constant 0 : i32
    %c0_i32_0 = arith.constant 0 : i32
    %c0_i32_1 = arith.constant 0 : i32
    %c0_i32_2 = arith.constant 0 : i32
    return %c0_i32, %c0_i32_0, %c0_i32_1 : i32, i32, i32
  }
  func.func @transform_15(%arg0: i32) -> (i32, i32, i32) {
    %c0_i32 = arith.constant 0 : i32
    %c0_i32_0 = arith.constant 0 : i32
    %c0_i32_1 = arith.constant 0 : i32
    %c0_i32_2 = arith.constant 0 : i32
    return %c0_i32, %c0_i32_0, %c0_i32_1 : i32, i32, i32
  }
  func.func @transform_16(%arg0: i32) -> (i32, i32, i32) {
    %c0_i32 = arith.constant 0 : i32
    %c0_i32_0 = arith.constant 0 : i32
    %c0_i32_1 = arith.constant 0 : i32
    %c0_i32_2 = arith.constant 0 : i32
    return %c0_i32, %c0_i32_0, %c0_i32_1 : i32, i32, i32
  }
  func.func @transform_17(%arg0: i32) -> (i32, i32) {
    %c0_i32 = arith.constant 0 : i32
    %c0_i32_0 = arith.constant 0 : i32
    return %arg0, %c0_i32 : i32, i32
  }
}

</mosaic_0001>

<llo_original>
// kernel: tpu_custom_call.1
$region0: #{tpu_custom_call.1}
  #allocation0 [shape = 'u32[]', space=smem, size = 0x4, offset = 0x4, fixed_abs, tag = 'smem constant byte address 0x4 - core index']
  #allocation1 [shape = 'u32[72,128]{1,0:T(1,128)}', space=vmem, size = 0x9000, scoped, tag = 'internal scratch']
  #allocation2 [shape = 'f32[16,32]{1,0:T(8,128)}', space=vmem, size = 0x2000, scoped, tag = 'scratch operand']
  %s0 = inlined_call_operand.hbm [shape: f32[16,32], index: 0, kind: input, shape index: {}]
  %s1 = inlined_call_operand.hbm [shape: f32[2,1,32], index: 1, kind: input, shape index: {}]
  %s2 = inlined_call_operand.hbm [shape: f32[2,1,32], index: 2, kind: input, shape index: {}]
  %s3 = inlined_call_operand.vmem [shape: f32[2,32,32], index: 3, kind: input, shape index: {}]
  %s4 = inlined_call_operand.vmem [shape: f32[2,1,32], index: 4, kind: input, shape index: {}]
  %s5 = inlined_call_operand.vmem [shape: f32[2,32,32], index: 5, kind: input, shape index: {}]
  %s6 = inlined_call_operand.vmem [shape: f32[2,1,32], index: 6, kind: input, shape index: {}]
  %s7 = inlined_call_operand.vmem [shape: f32[2,32,32], index: 7, kind: input, shape index: {}]
  %s8 = inlined_call_operand.hbm [shape: f32[2,1,32], index: 8, kind: input, shape index: {}]
  %s9 = inlined_call_operand.hbm [shape: f32[2,32,32], index: 9, kind: input, shape index: {}]
  %s10 = inlined_call_operand.vmem [shape: f32[2,1,32], index: 10, kind: input, shape index: {}]
  %s11 = inlined_call_operand.vmem [shape: f32[2,1,32], index: 11, kind: input, shape index: {}]
  %s12 = inlined_call_operand.vmem [shape: f32[2,1,32], index: 12, kind: input, shape index: {}]
  %s13 = inlined_call_operand.hbm [shape: f32[2,32,64], index: 13, kind: input, shape index: {}]
  %s14 = inlined_call_operand.hbm [shape: f32[2,1,64], index: 14, kind: input, shape index: {}]
  %s15 = inlined_call_operand.vmem [shape: f32[2,64,32], index: 15, kind: input, shape index: {}]
  %s16 = inlined_call_operand.vmem [shape: f32[2,1,32], index: 16, kind: input, shape index: {}]
  %s17 = inlined_call_operand.hbm [shape: f32[16,32], index: 17, kind: output, shape index: {}]
  %s18 = sld [smem:[#allocation0]]
  $region106: #{tpu_custom_call.1} parent=0
    _
  %s20 = ssub.s32 1, %s18
  %s21 = scalar_select 0, %s20, %s18
  $region1: #{tpu_custom_call.1} parent=0
    #allocation3 [shape = 'u8[8192]{0}', space=vmem, size = 0x2000, scoped, tag = 'input window, operand 0, single buffered']
    #allocation4 [shape = 's32[1]{0}', space=sflag, size = 0x4, scoped, tag = 'scoped memory for tpu_custom_call.1']
    #allocation5 [shape = 's32[1]{0}', space=sflag, size = 0x4, scoped, tag = 'scoped memory for tpu_custom_call.1']
    #allocation6 [shape = 'u8[1024]{0}', space=vmem, size = 0x400, scoped, tag = 'input window, operand 1, single buffered']
    #allocation7 [shape = 's32[1]{0}', space=sflag, size = 0x4, scoped, tag = 'scoped memory for tpu_custom_call.1']
    #allocation8 [shape = 'u8[1024]{0}', space=vmem, size = 0x400, scoped, tag = 'input window, operand 2, single buffered']
    #allocation9 [shape = 'u8[1024]{0}', space=vmem, size = 0x400, scoped, tag = 'input window, operand 8, single buffered']
    #allocation10 [shape = 's32[1]{0}', space=sflag, size = 0x4, scoped, tag = 'scoped memory for tpu_custom_call.1']
    #allocation11 [shape = 'u8[32768]{0}', space=vmem, size = 0x8000, scoped, tag = 'input window, operand 9, single buffered']
    #allocation12 [shape = 'u8[32768]{0}', space=vmem, size = 0x8000, scoped, tag = 'input window, operand 13, single buffered']
    #allocation13 [shape = 's32[1]{0}', space=sflag, size = 0x4, scoped, tag = 'scoped memory for tpu_custom_call.1']
    #allocation14 [shape = 'u8[1024]{0}', space=vmem, size = 0x400, scoped, tag = 'input window, operand 14, single buffered']
    #allocation15 [shape = 'u8[8192]{0}', space=vmem, size = 0x2000, scoped, tag = 'output window, operand 0, single buffered']
    %22 = vsyncpa [#allocation4], 0
    %23 = vsyncpa [#allocation7], 0
    %24 = vsyncpa [#allocation10], 0
    %25 = vsyncpa [#allocation13], 0
    %26 = vsyncpa [#allocation5], 0
    // Predicated region
    $region2: #{tpu_custom_call.1} parent=1 // pred_check
      _
    $region3: #{tpu_custom_call.1} parent=1 // pred_check_branch
      %28 = sbr.rel (0) target = $region5
    $region4: #{tpu_custom_call.1} parent=1 // pred_region
      %30 = vsyncadd [#allocation4], 0
      %s31 = sshll.u32 %s0, 4
      %s32 = int_to_ptr.hbm [resolvable:$true] %s31
      %s33 = sshll.u32 [#allocation3], 4
      %s34 = int_to_ptr.vmem [resolvable:$true] %s33
      %39 = dma.hbm_to_vmem [thread:$0]  %s32, 256, %s34, [#allocation4], 128, 128, 8
    $region5: #{tpu_custom_call.1} parent=1 // pred_fallthru
      _
    // Predicated region
    $region6: #{tpu_custom_call.1} parent=1 // pred_check
      _
    $region7: #{tpu_custom_call.1} parent=1 // pred_check_branch
      %41 = sbr.rel (0) target = $region9
    $region8: #{tpu_custom_call.1} parent=1 // pred_region
      %43 = vsyncadd [#allocation7], 0
      %s44 = sshll.u32 %s1, 4
      %s45 = int_to_ptr.hbm [resolvable:$true] %s44
      %s46 = sshll.u32 [#allocation6], 4
      %s47 = int_to_ptr.vmem [resolvable:$true] %s46
      %52 = dma.hbm_to_vmem [thread:$0]  %s45, 32, %s47, [#allocation7], 16, 16, 1
    $region9: #{tpu_custom_call.1} parent=1 // pred_fallthru
      _
    // Predicated region
    $region10: #{tpu_custom_call.1} parent=1 // pred_check
      _
    $region11: #{tpu_custom_call.1} parent=1 // pred_check_branch
      %54 = sbr.rel (0) target = $region13
    $region12: #{tpu_custom_call.1} parent=1 // pred_region
      %56 = vsyncadd [#allocation7], 0
      %s57 = sshll.u32 %s2, 4
      %s58 = int_to_ptr.hbm [resolvable:$true] %s57
      %s59 = sshll.u32 [#allocation8], 4
      %s60 = int_to_ptr.vmem [resolvable:$true] %s59
      %65 = dma.hbm_to_vmem [thread:$0]  %s58, 32, %s60, [#allocation7], 16, 16, 1
    $region13: #{tpu_custom_call.1} parent=1 // pred_fallthru
      _
    // Predicated region
    $region14: #{tpu_custom_call.1} parent=1 // pred_check
      _
    $region15: #{tpu_custom_call.1} parent=1 // pred_check_branch
      %67 = sbr.rel (0) target = $region17
    $region16: #{tpu_custom_call.1} parent=1 // pred_region
      _
    $region17: #{tpu_custom_call.1} parent=1 // pred_fallthru
      _
    // Predicated region
    $region18: #{tpu_custom_call.1} parent=1 // pred_check
      _
    $region19: #{tpu_custom_call.1} parent=1 // pred_check_branch
      %69 = sbr.rel (0) target = $region21
    $region20: #{tpu_custom_call.1} parent=1 // pred_region
      _
    $region21: #{tpu_custom_call.1} parent=1 // pred_fallthru
      _
    // Predicated region
    $region22: #{tpu_custom_call.1} parent=1 // pred_check
      _
    $region23: #{tpu_custom_call.1} parent=1 // pred_check_branch
      %71 = sbr.rel (0) target = $region25
    $region24: #{tpu_custom_call.1} parent=1 // pred_region
      _
    $region25: #{tpu_custom_call.1} parent=1 // pred_fallthru
      _
    // Predicated region
    $region26: #{tpu_custom_call.1} parent=1 // pred_check
      _
    $region27: #{tpu_custom_call.1} parent=1 // pred_check_branch
      %73 = sbr.rel (0) target = $region29
    $region28: #{tpu_custom_call.1} parent=1 // pred_region
      _
    $region29: #{tpu_custom_call.1} parent=1 // pred_fallthru
      _
    // Predicated region
    $region30: #{tpu_custom_call.1} parent=1 // pred_check
      _
    $region31: #{tpu_custom_call.1} parent=1 // pred_check_branch
      %75 = sbr.rel (0) target = $region33
    $region32: #{tpu_custom_call.1} parent=1 // pred_region
      _
    $region33: #{tpu_custom_call.1} parent=1 // pred_fallthru
      _
    // Predicated region
    $region34: #{tpu_custom_call.1} parent=1 // pred_check
      _
    $region35: #{tpu_custom_call.1} parent=1 // pred_check_branch
      %77 = sbr.rel (0) target = $region37
    $region36: #{tpu_custom_call.1} parent=1 // pred_region
      %79 = vsyncadd [#allocation10], 0
      %s80 = sshll.u32 %s8, 4
      %s81 = int_to_ptr.hbm [resolvable:$true] %s80
      %s82 = sshll.u32 [#allocation9], 4
      %s83 = int_to_ptr.vmem [resolvable:$true] %s82
      %88 = dma.hbm_to_vmem [thread:$0]  %s81, 32, %s83, [#allocation10], 16, 16, 1
    $region37: #{tpu_custom_call.1} parent=1 // pred_fallthru
      _
    // Predicated region
    $region38: #{tpu_custom_call.1} parent=1 // pred_check
      _
    $region39: #{tpu_custom_call.1} parent=1 // pred_check_branch
      %90 = sbr.rel (0) target = $region41
    $region40: #{tpu_custom_call.1} parent=1 // pred_region
      %92 = vsyncadd [#allocation10], 0
      %s93 = sshll.u32 %s9, 4
      %s94 = int_to_ptr.hbm [resolvable:$true] %s93
      %s95 = sshll.u32 [#allocation11], 4
      %s96 = int_to_ptr.vmem [resolvable:$true] %s95
      %101 = dma.hbm_to_vmem [thread:$0]  %s94, 1024, %s96, [#allocation10], 128, 128, 8
    $region41: #{tpu_custom_call.1} parent=1 // pred_fallthru
      _
    // Predicated region
    $region42: #{tpu_custom_call.1} parent=1 // pred_check
      _
    $region43: #{tpu_custom_call.1} parent=1 // pred_check_branch
      %103 = sbr.rel (0) target = $region45
    $region44: #{tpu_custom_call.1} parent=1 // pred_region
      _
    $region45: #{tpu_custom_call.1} parent=1 // pred_fallthru
      _
    // Predicated region
    $region46: #{tpu_custom_call.1} parent=1 // pred_check
      _
    $region47: #{tpu_custom_call.1} parent=1 // pred_check_branch
      %105 = sbr.rel (0) target = $region49
    $region48: #{tpu_custom_call.1} parent=1 // pred_region
      _
    $region49: #{tpu_custom_call.1} parent=1 // pred_fallthru
      _
    // Predicated region
    $region50: #{tpu_custom_call.1} parent=1 // pred_check
      _
    $region51: #{tpu_custom_call.1} parent=1 // pred_check_branch
      %107 = sbr.rel (0) target = $region53
    $region52: #{tpu_custom_call.1} parent=1 // pred_region
      _
    $region53: #{tpu_custom_call.1} parent=1 // pred_fallthru
      _
    // Predicated region
    $region54: #{tpu_custom_call.1} parent=1 // pred_check
      _
    $region55: #{tpu_custom_call.1} parent=1 // pred_check_branch
      %109 = sbr.rel (0) target = $region57
    $region56: #{tpu_custom_call.1} parent=1 // pred_region
      %111 = vsyncadd [#allocation13], 0
      %s112 = sshll.u32 %s13, 4
      %s113 = int_to_ptr.hbm [resolvable:$true] %s112
      %s114 = sshll.u32 [#allocation12], 4
      %s115 = int_to_ptr.vmem [resolvable:$true] %s114
      %120 = dma.hbm_to_vmem [thread:$0]  %s113, 1024, %s115, [#allocation13], 128, 128, 8
    $region57: #{tpu_custom_call.1} parent=1 // pred_fallthru
      _
    // Predicated region
    $region58: #{tpu_custom_call.1} parent=1 // pred_check
      _
    $region59: #{tpu_custom_call.1} parent=1 // pred_check_branch
      %122 = sbr.rel (0) target = $region61
    $region60: #{tpu_custom_call.1} parent=1 // pred_region
      %124 = vsyncadd [#allocation13], 0
      %s125 = sshll.u32 %s14, 4
      %s126 = int_to_ptr.hbm [resolvable:$true] %s125
      %s127 = sshll.u32 [#allocation14], 4
      %s128 = int_to_ptr.vmem [resolvable:$true] %s127
      %133 = dma.hbm_to_vmem [thread:$0]  %s126, 32, %s128, [#allocation13], 16, 16, 1
    $region61: #{tpu_custom_call.1} parent=1 // pred_fallthru
      _
    // Predicated region
    $region62: #{tpu_custom_call.1} parent=1 // pred_check
      _
    $region63: #{tpu_custom_call.1} parent=1 // pred_check_branch
      %135 = sbr.rel (0) target = $region65
    $region64: #{tpu_custom_call.1} parent=1 // pred_region
      _
    $region65: #{tpu_custom_call.1} parent=1 // pred_fallthru
      _
    // Predicated region
    $region66: #{tpu_custom_call.1} parent=1 // pred_check
      _
    $region67: #{tpu_custom_call.1} parent=1 // pred_check_branch
      %137 = sbr.rel (0) target = $region69
    $region68: #{tpu_custom_call.1} parent=1 // pred_region
      _
    $region69: #{tpu_custom_call.1} parent=1 // pred_fallthru
      _
    // Predicated region
    $region70: #{tpu_custom_call.1} parent=1 // pred_check
      _
    $region71: #{tpu_custom_call.1} parent=1 // pred_check_branch
      %139 = sbr.rel (0) target = $region73
    $region72: #{tpu_custom_call.1} parent=1 // pred_region
      %141 = dma.done [#allocation4], 256
    $region73: #{tpu_custom_call.1} parent=1 // pred_fallthru
      _
    // Predicated region
    $region74: #{tpu_custom_call.1} parent=1 // pred_check
      _
    $region75: #{tpu_custom_call.1} parent=1 // pred_check_branch
      %143 = sbr.rel (0) target = $region77
    $region76: #{tpu_custom_call.1} parent=1 // pred_region
      %145 = dma.done [#allocation7], 32
    $region77: #{tpu_custom_call.1} parent=1 // pred_fallthru
      _
    // Predicated region
    $region78: #{tpu_custom_call.1} parent=1 // pred_check
      _
    $region79: #{tpu_custom_call.1} parent=1 // pred_check_branch
      %147 = sbr.rel (0) target = $region81
    $region80: #{tpu_custom_call.1} parent=1 // pred_region
      %149 = dma.done [#allocation7], 32
    $region81: #{tpu_custom_call.1} parent=1 // pred_fallthru
      _
    // Predicated region
    $region82: #{tpu_custom_call.1} parent=1 // pred_check
      _
    $region83: #{tpu_custom_call.1} parent=1 // pred_check_branch
      %151 = sbr.rel (0) target = $region85
    $region84: #{tpu_custom_call.1} parent=1 // pred_region
      %153 = dma.done [#allocation10], 32
    $region85: #{tpu_custom_call.1} parent=1 // pred_fallthru
      _
    // Predicated region
    $region86: #{tpu_custom_call.1} parent=1 // pred_check
      _
    $region87: #{tpu_custom_call.1} parent=1 // pred_check_branch
      %155 = sbr.rel (0) target = $region89
    $region88: #{tpu_custom_call.1} parent=1 // pred_region
      %157 = dma.done [#allocation10], 1024
    $region89: #{tpu_custom_call.1} parent=1 // pred_fallthru
      _
    // Predicated region
    $region90: #{tpu_custom_call.1} parent=1 // pred_check
      _
    $region91: #{tpu_custom_call.1} parent=1 // pred_check_branch
      %159 = sbr.rel (0) target = $region93
    $region92: #{tpu_custom_call.1} parent=1 // pred_region
      %161 = dma.done [#allocation13], 1024
    $region93: #{tpu_custom_call.1} parent=1 // pred_fallthru
      _
    // Predicated region
    $region94: #{tpu_custom_call.1} parent=1 // pred_check
      _
    $region95: #{tpu_custom_call.1} parent=1 // pred_check_branch
      %163 = sbr.rel (0) target = $region97
    $region96: #{tpu_custom_call.1} parent=1 // pred_region
      %165 = dma.done [#allocation13], 32
    $region97: #{tpu_custom_call.1} parent=1 // pred_fallthru
      _
    %v166 = vld [vmem:[#allocation3] sm:$0xff]
    %v167 = vld [vmem:[#allocation3 + $0x8] sm:$0xff]
    %v168 = vld [vmem:[%s3] sm:$0xff]
    %v169 = vld [vmem:[%s3 + $0x8] sm:$0xff]
    %v170 = vld [vmem:[%s3 + $0x10] sm:$0xff]
    %v171 = vld [vmem:[%s3 + $0x18] sm:$0xff]
    %v172 = vld [vmem:[%s4] sm:$0x1]
    %v174 = vperm.slane %v172, 0
    %vm176 = vcmask 261120
    %v178 = vsel %vm176, %v166, 0
    %v181 = vsel %vm176, %v167, 0
    %183 = vmatpush.msra.mxu0 0.0
    %184 = vmatpush.msra.mxu0 0.0
    %185 = vmatpush.msra.mxu0 0.0
    %186 = vmatpush.msra.mxu0 0.0
    %187 = vmatpush.msra.mxu0 0.0
    %188 = vmatpush.msra.mxu0 0.0
    %189 = vmatpush.msra.mxu0 0.0
    %190 = vmatpush.msra.mxu0 0.0
    %191 = vmatpush.msra.mxu0 0.0
    %192 = vmatpush.msra.mxu0 0.0
    %193 = vmatpush.msra.mxu0 0.0
    %194 = vmatpush.msra.mxu0 0.0
    %195 = vmatpush.msra.mxu0 %v171
    %196 = vmatpush.msra.mxu0 %v170
    %197 = vmatpush.msra.mxu0 %v169
    %198 = vmatpush.msra.mxu0 %v168
    %199 = vmatmul.f32.gmra.mxu0 %v178
    %v200 = vpop.f32.mrf.mxu0
    %v201 = vadd.f32 %v174, %v200
    %202 = vmatmul.f32.gmra.mxu0 %v181
    %v203 = vpop.f32.mrf.mxu0
    %v204 = vadd.f32 %v174, %v203
    %205 = vdwg.mxu0
    %v206 = vld [vmem:[%s5] sm:$0xff]
    %v207 = vld [vmem:[%s5 + $0x8] sm:$0xff]
    %v208 = vld [vmem:[%s5 + $0x10] sm:$0xff]
    %v209 = vld [vmem:[%s5 + $0x18] sm:$0xff]
    %v210 = vld [vmem:[%s6] sm:$0x1]
    %v212 = vperm.slane %v210, 0
    %214 = vmatpush.msra.mxu0 0.0
    %215 = vmatpush.msra.mxu0 0.0
    %216 = vmatpush.msra.mxu0 0.0
    %217 = vmatpush.msra.mxu0 0.0
    %218 = vmatpush.msra.mxu0 0.0
    %219 = vmatpush.msra.mxu0 0.0
    %220 = vmatpush.msra.mxu0 0.0
    %221 = vmatpush.msra.mxu0 0.0
    %222 = vmatpush.msra.mxu0 0.0
    %223 = vmatpush.msra.mxu0 0.0
    %224 = vmatpush.msra.mxu0 0.0
    %225 = vmatpush.msra.mxu0 0.0
    %226 = vmatpush.msra.mxu0 %v209
    %227 = vmatpush.msra.mxu0 %v208
    %228 = vmatpush.msra.mxu0 %v207
    %229 = vmatpush.msra.mxu0 %v206
    %230 = vmatmul.f32.gmra.mxu0 %v178
    %v231 = vpop.f32.mrf.mxu0
    %v232 = vadd.f32 %v212, %v231
    %233 = vmatmul.f32.gmra.mxu0 %v181
    %v234 = vpop.f32.mrf.mxu0
    %v235 = vadd.f32 %v212, %v234
    %236 = vdwg.mxu0
    %v237 = vld [vmem:[%s7] sm:$0xff]
    %v238 = vld [vmem:[%s7 + $0x8] sm:$0xff]
    %v239 = vld [vmem:[%s7 + $0x10] sm:$0xff]
    %v240 = vld [vmem:[%s7 + $0x18] sm:$0xff]
    %v241 = vld [vmem:[#allocation9] sm:$0x1]
    %v243 = vperm.slane %v241, 0
    %245 = vmatpush.msra.mxu0 0.0
    %246 = vmatpush.msra.mxu0 0.0
    %247 = vmatpush.msra.mxu0 0.0
    %248 = vmatpush.msra.mxu0 0.0
    %249 = vmatpush.msra.mxu0 0.0
    %250 = vmatpush.msra.mxu0 0.0
    %251 = vmatpush.msra.mxu0 0.0
    %252 = vmatpush.msra.mxu0 0.0
    %253 = vmatpush.msra.mxu0 0.0
    %254 = vmatpush.msra.mxu0 0.0
    %255 = vmatpush.msra.mxu0 0.0
    %256 = vmatpush.msra.mxu0 0.0
    %257 = vmatpush.msra.mxu0 %v240
    %258 = vmatpush.msra.mxu0 %v239
    %259 = vmatpush.msra.mxu0 %v238
    %260 = vmatpush.msra.mxu0 %v237
    %261 = vmatmul.f32.gmra.mxu0 %v178
    %v262 = vpop.f32.mrf.mxu0
    %v263 = vadd.f32 %v243, %v262
    %264 = vmatmul.f32.gmra.mxu0 %v181
    %v265 = vpop.f32.mrf.mxu0
    %v266 = vadd.f32 %v243, %v265
    %267 = vdwg.mxu0
    %vm268 = vcmask 130048
    %v270 = vsel %vm268, %v201, 0
    %v273 = vsel %vm268, %v232, 0
    %275 = vmatpush.xpose.msra.mxu0 0.0
    %276 = vmatpush.xpose.msra.mxu0 0.0
    %277 = vmatpush.xpose.msra.mxu0 0.0
    %278 = vmatpush.xpose.msra.mxu0 0.0
    %279 = vmatpush.xpose.msra.mxu0 0.0
    %280 = vmatpush.xpose.msra.mxu0 0.0
    %281 = vmatpush.xpose.msra.mxu0 0.0
    %282 = vmatpush.xpose.msra.mxu0 0.0
    %283 = vmatpush.xpose.msra.mxu0 0.0
    %284 = vmatpush.xpose.msra.mxu0 0.0
    %285 = vmatpush.xpose.msra.mxu0 0.0
    %286 = vmatpush.xpose.msra.mxu0 0.0
    %287 = vmatpush.xpose.msra.mxu0 0.0
    %288 = vmatpush.xpose.msra.mxu0 0.0
    %289 = vmatpush.xpose.msra.mxu0 0.0
    %290 = vmatpush.xpose.msra.mxu0 %v273
    %291 = vmatmul.f32.gmra.mxu0 %v270
    %v292 = vpop.f32.mrf.mxu0
    %v293 = vadd.f32 0.0, %v292
    %294 = vdwg.mxu0
    %v296 = vsel %vm268, %v204, 0
    %v299 = vsel %vm268, %v235, 0
    %301 = vmatpush.xpose.msra.mxu0 0.0
    %302 = vmatpush.xpose.msra.mxu0 0.0
    %303 = vmatpush.xpose.msra.mxu0 0.0
    %304 = vmatpush.xpose.msra.mxu0 0.0
    %305 = vmatpush.xpose.msra.mxu0 0.0
    %306 = vmatpush.xpose.msra.mxu0 0.0
    %307 = vmatpush.xpose.msra.mxu0 0.0
    %308 = vmatpush.xpose.msra.mxu0 0.0
    %309 = vmatpush.xpose.msra.mxu0 0.0
    %310 = vmatpush.xpose.msra.mxu0 0.0
    %311 = vmatpush.xpose.msra.mxu0 0.0
    %312 = vmatpush.xpose.msra.mxu0 0.0
    %313 = vmatpush.xpose.msra.mxu0 0.0
    %314 = vmatpush.xpose.msra.mxu0 0.0
    %315 = vmatpush.xpose.msra.mxu0 0.0
    %316 = vmatpush.xpose.msra.mxu0 %v299
    %317 = vmatmul.f32.gmra.mxu0 %v296
    %v318 = vpop.f32.mrf.mxu0
    %v319 = vadd.f32 0.0, %v318
    %320 = vdwg.mxu0
    %vm321 = vcmask 64512
    %v322 = vsel %vm321, %v293, -inf
    %323 = vmax.xlane.f32.xlu0 %v322
    %v324 = vpop.xlane.xlu0 %323
    %v325 = vsel %vm321, %v319, -inf
    %326 = vmax.xlane.f32.xlu0 %v325
    %v327 = vpop.xlane.xlu0 %326
    %v328 = vsub.f32 %v293, %v324
    %v329 = vsub.f32 %v319, %v327
    %v330 = vmul.f32 %v328, 1.442695
    %v331 = vpow.pop %v330
    %v332 = vmul.f32 %v329, 1.442695
    %v333 = vpow.pop %v332
    %v334 = vsel %vm321, %v331, 0.0
    %335 = vadd.xlane.f32.xlu0 %v334
    %v336 = vpop.xlane.xlu0 %335
    %v337 = vsel %vm321, %v333, 0.0
    %338 = vadd.xlane.f32.xlu0 %v337
    %v339 = vpop.xlane.xlu0 %338
    %v340 = vrcp.pop %v336
    %v341 = vmul.f32 %v336, %v340
    %v342 = vsub.f32 1.0, %v341
    %v343 = vmul.f32 %v340, %v342
    %v344 = vadd.f32 %v340, %v343
    %vm345 = vweird.f32 %v336
    %vm346 = vweird.f32 %v340
    %vm347 = vmor %vm345, %vm346
    %v348 = vsel %vm347, %v340, %v344
    %v349 = vand.u32 2147483647, %v336
    %vm350 = vcmp.eq.f32.partialorder %v349, 8.507059e+37
    %v351 = vand.u32 %v336, 2147483648
    %v352 = vor.u32 1.1754944e-38, %v351
    %v353 = vsel %vm350, %v352, %v348
    %v354 = vmul.f32 %v331, %v353
    %v355 = vrcp.pop %v339
    %v356 = vmul.f32 %v339, %v355
    %v357 = vsub.f32 1.0, %v356
    %v358 = vmul.f32 %v355, %v357
    %v359 = vadd.f32 %v355, %v358
    %vm360 = vweird.f32 %v339
    %vm361 = vweird.f32 %v355
    %vm362 = vmor %vm360, %vm361
    %v363 = vsel %vm362, %v355, %v359
    %v364 = vand.u32 2147483647, %v339
    %vm365 = vcmp.eq.f32.partialorder %v364, 8.507059e+37
    %v366 = vand.u32 %v339, 2147483648
    %v367 = vor.u32 1.1754944e-38, %v366
    %v368 = vsel %vm365, %v367, %v363
    %v369 = vmul.f32 %v333, %v368
    %v371 = vsel %vm321, %v354, 0
    %373 = vmatpush.msra.mxu0 0.0
    %374 = vmatpush.msra.mxu0 0.0
    %375 = vmatpush.msra.mxu0 0.0
    %376 = vmatpush.msra.mxu0 0.0
    %377 = vmatpush.msra.mxu0 0.0
    %378 = vmatpush.msra.mxu0 0.0
    %379 = vmatpush.msra.mxu0 0.0
    %380 = vmatpush.msra.mxu0 0.0
    %381 = vmatpush.msra.mxu0 0.0
    %382 = vmatpush.msra.mxu0 0.0
    %383 = vmatpush.msra.mxu0 0.0
    %384 = vmatpush.msra.mxu0 0.0
    %385 = vmatpush.msra.mxu0 0.0
    %386 = vmatpush.msra.mxu0 0.0
    %387 = vmatpush.msra.mxu0 0.0
    %388 = vmatpush.msra.mxu0 %v263
    %389 = vmatmul.f32.gmra.mxu0 %v371
    %v390 = vpop.f32.mrf.mxu0
    %v391 = vadd.f32 0.0, %v390
    %392 = vdwg.mxu0
    %v394 = vsel %vm321, %v369, 0
    %396 = vmatpush.msra.mxu0 0.0
    %397 = vmatpush.msra.mxu0 0.0
    %398 = vmatpush.msra.mxu0 0.0
    %399 = vmatpush.msra.mxu0 0.0
    %400 = vmatpush.msra.mxu0 0.0
    %401 = vmatpush.msra.mxu0 0.0
    %402 = vmatpush.msra.mxu0 0.0
    %403 = vmatpush.msra.mxu0 0.0
    %404 = vmatpush.msra.mxu0 0.0
    %405 = vmatpush.msra.mxu0 0.0
    %406 = vmatpush.msra.mxu0 0.0
    %407 = vmatpush.msra.mxu0 0.0
    %408 = vmatpush.msra.mxu0 0.0
    %409 = vmatpush.msra.mxu0 0.0
    %410 = vmatpush.msra.mxu0 0.0
    %411 = vmatpush.msra.mxu0 %v266
    %412 = vmatmul.f32.gmra.mxu0 %v394
    %v413 = vpop.f32.mrf.mxu0
    %v414 = vadd.f32 0.0, %v413
    %415 = vdwg.mxu0
    %416 = vst.msk [vmem:[#allocation2] sm:$0xff] %vm268, %v391
    %417 = vst.msk [vmem:[#allocation2 + $0x8] sm:$0xff] %vm268, %v414
    %418 = vrot.lane.b32.xlu0 %v201, 112
    %v419 = vpop.permute.xlu0 %418
    %420 = vrot.lane.b32.xlu0 %v232, 112
    %v421 = vpop.permute.xlu0 %420
    %v422 = vsel %vm268, %v419, 0
    %v424 = vsel %vm268, %v421, 0
    %426 = vmatpush.xpose.msra.mxu0 0.0
    %427 = vmatpush.xpose.msra.mxu0 0.0
    %428 = vmatpush.xpose.msra.mxu0 0.0
    %429 = vmatpush.xpose.msra.mxu0 0.0
    %430 = vmatpush.xpose.msra.mxu0 0.0
    %431 = vmatpush.xpose.msra.mxu0 0.0
    %432 = vmatpush.xpose.msra.mxu0 0.0
    %433 = vmatpush.xpose.msra.mxu0 0.0
    %434 = vmatpush.xpose.msra.mxu0 0.0
    %435 = vmatpush.xpose.msra.mxu0 0.0
    %436 = vmatpush.xpose.msra.mxu0 0.0
    %437 = vmatpush.xpose.msra.mxu0 0.0
    %438 = vmatpush.xpose.msra.mxu0 0.0
    %439 = vmatpush.xpose.msra.mxu0 0.0
    %440 = vmatpush.xpose.msra.mxu0 0.0
    %441 = vmatpush.xpose.msra.mxu0 %v424
    %442 = vmatmul.f32.gmra.mxu0 %v422
    %v443 = vpop.f32.mrf.mxu0
    %v444 = vadd.f32 0.0, %v443
    %445 = vdwg.mxu0
    %446 = vrot.lane.b32.xlu0 %v204, 112
    %v447 = vpop.permute.xlu0 %446
    %448 = vrot.lane.b32.xlu0 %v235, 112
    %v449 = vpop.permute.xlu0 %448
    %v450 = vsel %vm268, %v447, 0
    %v452 = vsel %vm268, %v449, 0
    %454 = vmatpush.xpose.msra.mxu0 0.0
    %455 = vmatpush.xpose.msra.mxu0 0.0
    %456 = vmatpush.xpose.msra.mxu0 0.0
    %457 = vmatpush.xpose.msra.mxu0 0.0
    %458 = vmatpush.xpose.msra.mxu0 0.0
    %459 = vmatpush.xpose.msra.mxu0 0.0
    %460 = vmatpush.xpose.msra.mxu0 0.0
    %461 = vmatpush.xpose.msra.mxu0 0.0
    %462 = vmatpush.xpose.msra.mxu0 0.0
    %463 = vmatpush.xpose.msra.mxu0 0.0
    %464 = vmatpush.xpose.msra.mxu0 0.0
    %465 = vmatpush.xpose.msra.mxu0 0.0
    %466 = vmatpush.xpose.msra.mxu0 0.0
    %467 = vmatpush.xpose.msra.mxu0 0.0
    %468 = vmatpush.xpose.msra.mxu0 0.0
    %469 = vmatpush.xpose.msra.mxu0 %v452
    %470 = vmatmul.f32.gmra.mxu0 %v450
    %v471 = vpop.f32.mrf.mxu0
    %v472 = vadd.f32 0.0, %v471
    %473 = vdwg.mxu0
    %v474 = vsel %vm321, %v444, -inf
    %475 = vmax.xlane.f32.xlu0 %v474
    %v476 = vpop.xlane.xlu0 %475
    %v477 = vsel %vm321, %v472, -inf
    %478 = vmax.xlane.f32.xlu0 %v477
    %v479 = vpop.xlane.xlu0 %478
    %v480 = vsub.f32 %v444, %v476
    %v481 = vsub.f32 %v472, %v479
    %v482 = vmul.f32 %v480, 1.442695
    %v483 = vpow.pop %v482
    %v484 = vmul.f32 %v481, 1.442695
    %v485 = vpow.pop %v484
    %v486 = vsel %vm321, %v483, 0.0
    %487 = vadd.xlane.f32.xlu0 %v486
    %v488 = vpop.xlane.xlu0 %487
    %v489 = vsel %vm321, %v485, 0.0
    %490 = vadd.xlane.f32.xlu0 %v489
    %v491 = vpop.xlane.xlu0 %490
    %v492 = vrcp.pop %v488
    %v493 = vmul.f32 %v488, %v492
    %v494 = vsub.f32 1.0, %v493
    %v495 = vmul.f32 %v492, %v494
    %v496 = vadd.f32 %v492, %v495
    %vm497 = vweird.f32 %v488
    %vm498 = vweird.f32 %v492
    %vm499 = vmor %vm497, %vm498
    %v500 = vsel %vm499, %v492, %v496
    %v501 = vand.u32 2147483647, %v488
    %vm502 = vcmp.eq.f32.partialorder %v501, 8.507059e+37
    %v503 = vand.u32 %v488, 2147483648
    %v504 = vor.u32 1.1754944e-38, %v503
    %v505 = vsel %vm502, %v504, %v500
    %v506 = vmul.f32 %v483, %v505
    %v507 = vrcp.pop %v491
    %v508 = vmul.f32 %v491, %v507
    %v509 = vsub.f32 1.0, %v508
    %v510 = vmul.f32 %v507, %v509
    %v511 = vadd.f32 %v507, %v510
    %vm512 = vweird.f32 %v491
    %vm513 = vweird.f32 %v507
    %vm514 = vmor %vm512, %vm513
    %v515 = vsel %vm514, %v507, %v511
    %v516 = vand.u32 2147483647, %v491
    %vm517 = vcmp.eq.f32.partialorder %v516, 8.507059e+37
    %v518 = vand.u32 %v491, 2147483648
    %v519 = vor.u32 1.1754944e-38, %v518
    %v520 = vsel %vm517, %v519, %v515
    %v521 = vmul.f32 %v485, %v520
    %523 = vrot.lane.b32.xlu0 %v263, 112
    %v524 = vpop.permute.xlu0 %523
    %v527 = vsel %vm321, %v506, 0
    %529 = vmatpush.msra.mxu0 0.0
    %530 = vmatpush.msra.mxu0 0.0
    %531 = vmatpush.msra.mxu0 0.0
    %532 = vmatpush.msra.mxu0 0.0
    %533 = vmatpush.msra.mxu0 0.0
    %534 = vmatpush.msra.mxu0 0.0
    %535 = vmatpush.msra.mxu0 0.0
    %536 = vmatpush.msra.mxu0 0.0
    %537 = vmatpush.msra.mxu0 0.0
    %538 = vmatpush.msra.mxu0 0.0
    %539 = vmatpush.msra.mxu0 0.0
    %540 = vmatpush.msra.mxu0 0.0
    %541 = vmatpush.msra.mxu0 0.0
    %542 = vmatpush.msra.mxu0 0.0
    %543 = vmatpush.msra.mxu0 0.0
    %544 = vmatpush.msra.mxu0 %v524
    %545 = vmatmul.f32.gmra.mxu0 %v527
    %v546 = vpop.f32.mrf.mxu0
    %v547 = vadd.f32 0.0, %v546
    %548 = vdwg.mxu0
    %550 = vrot.lane.b32.xlu0 %v266, 112
    %v551 = vpop.permute.xlu0 %550
    %v554 = vsel %vm321, %v521, 0
    %556 = vmatpush.msra.mxu0 0.0
    %557 = vmatpush.msra.mxu0 0.0
    %558 = vmatpush.msra.mxu0 0.0
    %559 = vmatpush.msra.mxu0 0.0
    %560 = vmatpush.msra.mxu0 0.0
    %561 = vmatpush.msra.mxu0 0.0
    %562 = vmatpush.msra.mxu0 0.0
    %563 = vmatpush.msra.mxu0 0.0
    %564 = vmatpush.msra.mxu0 0.0
    %565 = vmatpush.msra.mxu0 0.0
    %566 = vmatpush.msra.mxu0 0.0
    %567 = vmatpush.msra.mxu0 0.0
    %568 = vmatpush.msra.mxu0 0.0
    %569 = vmatpush.msra.mxu0 0.0
    %570 = vmatpush.msra.mxu0 0.0
    %571 = vmatpush.msra.mxu0 %v551
    %572 = vmatmul.f32.gmra.mxu0 %v554
    %v573 = vpop.f32.mrf.mxu0
    %v574 = vadd.f32 0.0, %v573
    %575 = vdwg.mxu0
    %578 = vrot.lane.b32.xlu0 %v547, 16
    %v579 = vpop.permute.xlu0 %578
    %580 = vrot.lane.b32.xlu0 %v574, 16
    %v581 = vpop.permute.xlu0 %580
    %vm584 = vcmask 261248
    %585 = vst.msk [vmem:[#allocation2] sm:$0xff] %vm584, %v579
    %586 = vst.msk [vmem:[#allocation2 + $0x8] sm:$0xff] %vm584, %v581
    %v587 = vld [vmem:[#allocation2] sm:$0xff]
    %v588 = vld [vmem:[#allocation2 + $0x8] sm:$0xff]
    %v589 = vld [vmem:[#allocation11] sm:$0xff]
    %v590 = vld [vmem:[#allocation11 + $0x8] sm:$0xff]
    %v591 = vld [vmem:[#allocation11 + $0x10] sm:$0xff]
    %v592 = vld [vmem:[#allocation11 + $0x18] sm:$0xff]
    %v593 = vld [vmem:[%s10] sm:$0x1]
    %v595 = vperm.slane %v593, 0
    %v598 = vsel %vm176, %v587, 0
    %v601 = vsel %vm176, %v588, 0
    %603 = vmatpush.msra.mxu0 0.0
    %604 = vmatpush.msra.mxu0 0.0
    %605 = vmatpush.msra.mxu0 0.0
    %606 = vmatpush.msra.mxu0 0.0
    %607 = vmatpush.msra.mxu0 0.0
    %608 = vmatpush.msra.mxu0 0.0
    %609 = vmatpush.msra.mxu0 0.0
    %610 = vmatpush.msra.mxu0 0.0
    %611 = vmatpush.msra.mxu0 0.0
    %612 = vmatpush.msra.mxu0 0.0
    %613 = vmatpush.msra.mxu0 0.0
    %614 = vmatpush.msra.mxu0 0.0
    %615 = vmatpush.msra.mxu0 %v592
    %616 = vmatpush.msra.mxu0 %v591
    %617 = vmatpush.msra.mxu0 %v590
    %618 = vmatpush.msra.mxu0 %v589
    %619 = vmatmul.f32.gmra.mxu0 %v598
    %v620 = vpop.f32.mrf.mxu0
    %v621 = vadd.f32 %v595, %v620
    %622 = vmatmul.f32.gmra.mxu0 %v601
    %v623 = vpop.f32.mrf.mxu0
    %v624 = vadd.f32 %v595, %v623
    %625 = vdwg.mxu0
    %v626 = vadd.f32 %v166, %v621
    %v627 = vadd.f32 %v167, %v624
    %v628 = vld [vmem:[%s11] sm:$0x1]
    %v629 = vld [vmem:[%s12] sm:$0x1]
    %v630 = vsel %vm176, %v626, 0.0
    %631 = vadd.xlane.f32.xlu0 %v630
    %v632 = vpop.xlane.xlu0 %631
    %v633 = vsel %vm176, %v627, 0.0
    %634 = vadd.xlane.f32.xlu0 %v633
    %v635 = vpop.xlane.xlu0 %634
    %v636 = vrcp.pop 32.0
    %v637 = vmul.f32 32.0, %v636
    %v638 = vsub.f32 1.0, %v637
    %v639 = vmul.f32 %v636, %v638
    %v640 = vadd.f32 %v636, %v639
    %vm641 = vweird.f32 %v636
    %v642 = vsel %vm641, %v636, %v640
    %v643 = vmul.f32 %v632, %v642
    %v644 = vmul.f32 %v635, %v642
    %v645 = vsub.f32 %v626, %v643
    %v646 = vsub.f32 %v627, %v644
    %v647 = vmul.f32 %v645, %v645
    %v648 = vmul.f32 %v646, %v646
    %v649 = vsel %vm176, %v647, 0.0
    %650 = vadd.xlane.f32.xlu0 %v649
    %v651 = vpop.xlane.xlu0 %650
    %v652 = vsel %vm176, %v648, 0.0
    %653 = vadd.xlane.f32.xlu0 %v652
    %v654 = vpop.xlane.xlu0 %653
    %v655 = vmul.f32 %v651, %v642
    %v656 = vmul.f32 %v654, %v642
    %v657 = vadd.f32 %v655, 1e-05
    %v658 = vadd.f32 %v656, 1e-05
    %v659 = vrsqrt.pop %v657
    %v660 = vmul.f32 %v659, %v657
    %v661 = vmul.f32 %v660, %v659
    %v662 = vmul.f32 0.5, %v661
    %v663 = vsub.f32 1.5, %v662
    %v664 = vmul.f32 %v659, %v663
    %vm665 = vweird.f32 %v657
    %vm666 = vweird.f32 %v659
    %vm667 = vmor %vm665, %vm666
    %v668 = vsel %vm667, %v659, %v664
    %v669 = vrsqrt.pop %v658
    %v670 = vmul.f32 %v669, %v658
    %v671 = vmul.f32 %v670, %v669
    %v672 = vmul.f32 0.5, %v671
    %v673 = vsub.f32 1.5, %v672
    %v674 = vmul.f32 %v669, %v673
    %vm675 = vweird.f32 %v658
    %vm676 = vweird.f32 %v669
    %vm677 = vmor %vm675, %vm676
    %v678 = vsel %vm677, %v669, %v674
    %v679 = vmul.f32 %v645, %v668
    %v680 = vmul.f32 %v646, %v678
    %v682 = vperm.slane %v628, 0
    %v684 = vmul.f32 %v679, %v682
    %v685 = vmul.f32 %v680, %v682
    %v687 = vperm.slane %v629, 0
    %v689 = vadd.f32 %v684, %v687
    %v690 = vadd.f32 %v685, %v687
    %v691 = vld [vmem:[#allocation12] sm:$0xff]
    %v692 = vld [vmem:[#allocation12 + $0x8] sm:$0xff]
    %v693 = vld [vmem:[#allocation12 + $0x10] sm:$0xff]
    %v694 = vld [vmem:[#allocation12 + $0x18] sm:$0xff]
    %v695 = vld [vmem:[#allocation14] sm:$0x1]
    %v697 = vperm.slane %v695, 0
    %v700 = vsel %vm176, %v689, 0
    %v703 = vsel %vm176, %v690, 0
    %705 = vmatpush.msra.mxu0 0.0
    %706 = vmatpush.msra.mxu0 0.0
    %707 = vmatpush.msra.mxu0 0.0
    %708 = vmatpush.msra.mxu0 0.0
    %709 = vmatpush.msra.mxu0 0.0
    %710 = vmatpush.msra.mxu0 0.0
    %711 = vmatpush.msra.mxu0 0.0
    %712 = vmatpush.msra.mxu0 0.0
    %713 = vmatpush.msra.mxu0 0.0
    %714 = vmatpush.msra.mxu0 0.0
    %715 = vmatpush.msra.mxu0 0.0
    %716 = vmatpush.msra.mxu0 0.0
    %717 = vmatpush.msra.mxu0 %v694
    %718 = vmatpush.msra.mxu0 %v693
    %719 = vmatpush.msra.mxu0 %v692
    %720 = vmatpush.msra.mxu0 %v691
    %721 = vmatmul.f32.gmra.mxu0 %v700
    %v722 = vpop.f32.mrf.mxu0
    %v723 = vadd.f32 %v697, %v722
    %724 = vmatmul.f32.gmra.mxu0 %v703
    %v725 = vpop.f32.mrf.mxu0
    %v726 = vadd.f32 %v697, %v725
    %727 = vdwg.mxu0
    %v728 = vmax.f32 %v723, 0.0
    %v729 = vmax.f32 %v726, 0.0
    %v730 = vld [vmem:[%s15] sm:$0xff]
    %v731 = vld [vmem:[%s15 + $0x8] sm:$0xff]
    %v732 = vld [vmem:[%s15 + $0x10] sm:$0xff]
    %v733 = vld [vmem:[%s15 + $0x18] sm:$0xff]
    %v734 = vld [vmem:[%s15 + $0x20] sm:$0xff]
    %v735 = vld [vmem:[%s15 + $0x28] sm:$0xff]
    %v736 = vld [vmem:[%s15 + $0x30] sm:$0xff]
    %v737 = vld [vmem:[%s15 + $0x38] sm:$0xff]
    %vm738 = vcmask 523264
    %v740 = vsel %vm738, %v728, 0
    %v743 = vsel %vm738, %v729, 0
    %745 = vmatpush.msra.mxu0 0.0
    %746 = vmatpush.msra.mxu0 0.0
    %747 = vmatpush.msra.mxu0 0.0
    %748 = vmatpush.msra.mxu0 0.0
    %749 = vmatpush.msra.mxu0 0.0
    %750 = vmatpush.msra.mxu0 0.0
    %751 = vmatpush.msra.mxu0 0.0
    %752 = vmatpush.msra.mxu0 0.0
    %753 = vmatpush.msra.mxu0 %v737
    %754 = vmatpush.msra.mxu0 %v736
    %755 = vmatpush.msra.mxu0 %v735
    %756 = vmatpush.msra.mxu0 %v734
    %757 = vmatpush.msra.mxu0 %v733
    %758 = vmatpush.msra.mxu0 %v732
    %759 = vmatpush.msra.mxu0 %v731
    %760 = vmatpush.msra.mxu0 %v730
    %761 = vmatmul.f32.gmra.mxu0 %v740
    %v762 = vpop.f32.mrf.mxu0
    %v763 = vadd.f32 0.0, %v762
    %764 = vmatmul.f32.gmra.mxu0 %v743
    %v765 = vpop.f32.mrf.mxu0
    %v766 = vadd.f32 0.0, %v765
    %767 = vdwg.mxu0
    %v768 = vadd.f32 %v626, %v763
    %v769 = vadd.f32 %v627, %v766
    %v770 = vld [vmem:[%s16] sm:$0x1]
    %v772 = vperm.slane %v770, 0
    %v774 = vadd.f32 %v768, %v772
    %v775 = vadd.f32 %v769, %v772
    %s776 = scalar_lea.vmem [#allocation6], 1
    %v777 = vld [vmem:[%s776] sm:$0x1]
    %s778 = scalar_lea.vmem [#allocation8], 1
    %v779 = vld [vmem:[%s778] sm:$0x1]
    %v780 = vsel %vm176, %v774, 0.0
    %781 = vadd.xlane.f32.xlu0 %v780
    %v782 = vpop.xlane.xlu0 %781
    %v783 = vsel %vm176, %v775, 0.0
    %784 = vadd.xlane.f32.xlu0 %v783
    %v785 = vpop.xlane.xlu0 %784
    %v786 = vmul.f32 %v782, %v642
    %v787 = vmul.f32 %v785, %v642
    %v788 = vsub.f32 %v774, %v786
    %v789 = vsub.f32 %v775, %v787
    %v790 = vmul.f32 %v788, %v788
    %v791 = vmul.f32 %v789, %v789
    %v792 = vsel %vm176, %v790, 0.0
    %793 = vadd.xlane.f32.xlu0 %v792
    %v794 = vpop.xlane.xlu0 %793
    %v795 = vsel %vm176, %v791, 0.0
    %796 = vadd.xlane.f32.xlu0 %v795
    %v797 = vpop.xlane.xlu0 %796
    %v798 = vmul.f32 %v794, %v642
    %v799 = vmul.f32 %v797, %v642
    %v800 = vadd.f32 %v798, 1e-05
    %v801 = vadd.f32 %v799, 1e-05
    %v802 = vrsqrt.pop %v800
    %v803 = vmul.f32 %v802, %v800
    %v804 = vmul.f32 %v803, %v802
    %v805 = vmul.f32 0.5, %v804
    %v806 = vsub.f32 1.5, %v805
    %v807 = vmul.f32 %v802, %v806
    %vm808 = vweird.f32 %v800
    %vm809 = vweird.f32 %v802
    %vm810 = vmor %vm808, %vm809
    %v811 = vsel %vm810, %v802, %v807
    %v812 = vrsqrt.pop %v801
    %v813 = vmul.f32 %v812, %v801
    %v814 = vmul.f32 %v813, %v812
    %v815 = vmul.f32 0.5, %v814
    %v816 = vsub.f32 1.5, %v815
    %v817 = vmul.f32 %v812, %v816
    %vm818 = vweird.f32 %v801
    %vm819 = vweird.f32 %v812
    %vm820 = vmor %vm818, %vm819
    %v821 = vsel %vm820, %v812, %v817
    %v822 = vmul.f32 %v788, %v811
    %v823 = vmul.f32 %v789, %v821
    %v825 = vperm.slane %v777, 0
    %v827 = vmul.f32 %v822, %v825
    %v828 = vmul.f32 %v823, %v825
    %v830 = vperm.slane %v779, 0
    %v832 = vadd.f32 %v827, %v830
    %v833 = vadd.f32 %v828, %v830
    %s834 = scalar_lea.vmem %s3, 32
    %v835 = vld [vmem:[%s834] sm:$0xff]
    %v836 = vld [vmem:[%s834 + $0x8] sm:$0xff]
    %v837 = vld [vmem:[%s834 + $0x10] sm:$0xff]
    %v838 = vld [vmem:[%s834 + $0x18] sm:$0xff]
    %s839 = scalar_lea.vmem %s4, 1
    %v840 = vld [vmem:[%s839] sm:$0x1]
    %v842 = vperm.slane %v840, 0
    %v845 = vsel %vm176, %v832, 0
    %v848 = vsel %vm176, %v833, 0
    %850 = vmatpush.msra.mxu0 0.0
    %851 = vmatpush.msra.mxu0 0.0
    %852 = vmatpush.msra.mxu0 0.0
    %853 = vmatpush.msra.mxu0 0.0
    %854 = vmatpush.msra.mxu0 0.0
    %855 = vmatpush.msra.mxu0 0.0
    %856 = vmatpush.msra.mxu0 0.0
    %857 = vmatpush.msra.mxu0 0.0
    %858 = vmatpush.msra.mxu0 0.0
    %859 = vmatpush.msra.mxu0 0.0
    %860 = vmatpush.msra.mxu0 0.0
    %861 = vmatpush.msra.mxu0 0.0
    %862 = vmatpush.msra.mxu0 %v838
    %863 = vmatpush.msra.mxu0 %v837
    %864 = vmatpush.msra.mxu0 %v836
    %865 = vmatpush.msra.mxu0 %v835
    %866 = vmatmul.f32.gmra.mxu0 %v845
    %v867 = vpop.f32.mrf.mxu0
    %v868 = vadd.f32 %v842, %v867
    %869 = vmatmul.f32.gmra.mxu0 %v848
    %v870 = vpop.f32.mrf.mxu0
    %v871 = vadd.f32 %v842, %v870
    %872 = vdwg.mxu0
    %s873 = scalar_lea.vmem %s5, 32
    %v874 = vld [vmem:[%s873] sm:$0xff]
    %v875 = vld [vmem:[%s873 + $0x8] sm:$0xff]
    %v876 = vld [vmem:[%s873 + $0x10] sm:$0xff]
    %v877 = vld [vmem:[%s873 + $0x18] sm:$0xff]
    %s878 = scalar_lea.vmem %s6, 1
    %v879 = vld [vmem:[%s878] sm:$0x1]
    %v881 = vperm.slane %v879, 0
    %883 = vmatpush.msra.mxu0 0.0
    %884 = vmatpush.msra.mxu0 0.0
    %885 = vmatpush.msra.mxu0 0.0
    %886 = vmatpush.msra.mxu0 0.0
    %887 = vmatpush.msra.mxu0 0.0
    %888 = vmatpush.msra.mxu0 0.0
    %889 = vmatpush.msra.mxu0 0.0
    %890 = vmatpush.msra.mxu0 0.0
    %891 = vmatpush.msra.mxu0 0.0
    %892 = vmatpush.msra.mxu0 0.0
    %893 = vmatpush.msra.mxu0 0.0
    %894 = vmatpush.msra.mxu0 0.0
    %895 = vmatpush.msra.mxu0 %v877
    %896 = vmatpush.msra.mxu0 %v876
    %897 = vmatpush.msra.mxu0 %v875
    %898 = vmatpush.msra.mxu0 %v874
    %899 = vmatmul.f32.gmra.mxu0 %v845
    %v900 = vpop.f32.mrf.mxu0
    %v901 = vadd.f32 %v881, %v900
    %902 = vmatmul.f32.gmra.mxu0 %v848
    %v903 = vpop.f32.mrf.mxu0
    %v904 = vadd.f32 %v881, %v903
    %905 = vdwg.mxu0
    %s906 = scalar_lea.vmem %s7, 32
    %v907 = vld [vmem:[%s906] sm:$0xff]
    %v908 = vld [vmem:[%s906 + $0x8] sm:$0xff]
    %v909 = vld [vmem:[%s906 + $0x10] sm:$0xff]
    %v910 = vld [vmem:[%s906 + $0x18] sm:$0xff]
    %s911 = scalar_lea.vmem [#allocation9], 1
    %v912 = vld [vmem:[%s911] sm:$0x1]
    %v914 = vperm.slane %v912, 0
    %916 = vmatpush.msra.mxu0 0.0
    %917 = vmatpush.msra.mxu0 0.0
    %918 = vmatpush.msra.mxu0 0.0
    %919 = vmatpush.msra.mxu0 0.0
    %920 = vmatpush.msra.mxu0 0.0
    %921 = vmatpush.msra.mxu0 0.0
    %922 = vmatpush.msra.mxu0 0.0
    %923 = vmatpush.msra.mxu0 0.0
    %924 = vmatpush.msra.mxu0 0.0
    %925 = vmatpush.msra.mxu0 0.0
    %926 = vmatpush.msra.mxu0 0.0
    %927 = vmatpush.msra.mxu0 0.0
    %928 = vmatpush.msra.mxu0 %v910
    %929 = vmatpush.msra.mxu0 %v909
    %930 = vmatpush.msra.mxu0 %v908
    %931 = vmatpush.msra.mxu0 %v907
    %932 = vmatmul.f32.gmra.mxu0 %v845
    %v933 = vpop.f32.mrf.mxu0
    %v934 = vadd.f32 %v914, %v933
    %935 = vmatmul.f32.gmra.mxu0 %v848
    %v936 = vpop.f32.mrf.mxu0
    %v937 = vadd.f32 %v914, %v936
    %938 = vdwg.mxu0
    %v940 = vsel %vm268, %v868, 0
    %v943 = vsel %vm268, %v901, 0
    %945 = vmatpush.xpose.msra.mxu0 0.0
    %946 = vmatpush.xpose.msra.mxu0 0.0
    %947 = vmatpush.xpose.msra.mxu0 0.0
    %948 = vmatpush.xpose.msra.mxu0 0.0
    %949 = vmatpush.xpose.msra.mxu0 0.0
    %950 = vmatpush.xpose.msra.mxu0 0.0
    %951 = vmatpush.xpose.msra.mxu0 0.0
    %952 = vmatpush.xpose.msra.mxu0 0.0
    %953 = vmatpush.xpose.msra.mxu0 0.0
    %954 = vmatpush.xpose.msra.mxu0 0.0
    %955 = vmatpush.xpose.msra.mxu0 0.0
    %956 = vmatpush.xpose.msra.mxu0 0.0
    %957 = vmatpush.xpose.msra.mxu0 0.0
    %958 = vmatpush.xpose.msra.mxu0 0.0
    %959 = vmatpush.xpose.msra.mxu0 0.0
    %960 = vmatpush.xpose.msra.mxu0 %v943
    %961 = vmatmul.f32.gmra.mxu0 %v940
    %v962 = vpop.f32.mrf.mxu0
    %v963 = vadd.f32 0.0, %v962
    %964 = vdwg.mxu0
    %v966 = vsel %vm268, %v871, 0
    %v969 = vsel %vm268, %v904, 0
    %971 = vmatpush.xpose.msra.mxu0 0.0
    %972 = vmatpush.xpose.msra.mxu0 0.0
    %973 = vmatpush.xpose.msra.mxu0 0.0
    %974 = vmatpush.xpose.msra.mxu0 0.0
    %975 = vmatpush.xpose.msra.mxu0 0.0
    %976 = vmatpush.xpose.msra.mxu0 0.0
    %977 = vmatpush.xpose.msra.mxu0 0.0
    %978 = vmatpush.xpose.msra.mxu0 0.0
    %979 = vmatpush.xpose.msra.mxu0 0.0
    %980 = vmatpush.xpose.msra.mxu0 0.0
    %981 = vmatpush.xpose.msra.mxu0 0.0
    %982 = vmatpush.xpose.msra.mxu0 0.0
    %983 = vmatpush.xpose.msra.mxu0 0.0
    %984 = vmatpush.xpose.msra.mxu0 0.0
    %985 = vmatpush.xpose.msra.mxu0 0.0
    %986 = vmatpush.xpose.msra.mxu0 %v969
    %987 = vmatmul.f32.gmra.mxu0 %v966
    %v988 = vpop.f32.mrf.mxu0
    %v989 = vadd.f32 0.0, %v988
    %990 = vdwg.mxu0
    %v991 = vsel %vm321, %v963, -inf
    %992 = vmax.xlane.f32.xlu0 %v991
    %v993 = vpop.xlane.xlu0 %992
    %v994 = vsel %vm321, %v989, -inf
    %995 = vmax.xlane.f32.xlu0 %v994
    %v996 = vpop.xlane.xlu0 %995
    %v997 = vsub.f32 %v963, %v993
    %v998 = vsub.f32 %v989, %v996
    %v999 = vmul.f32 %v997, 1.442695
    %v1000 = vpow.pop %v999
    %v1001 = vmul.f32 %v998, 1.442695
    %v1002 = vpow.pop %v1001
    %v1003 = vsel %vm321, %v1000, 0.0
    %1004 = vadd.xlane.f32.xlu0 %v1003
    %v1005 = vpop.xlane.xlu0 %1004
    %v1006 = vsel %vm321, %v1002, 0.0
    %1007 = vadd.xlane.f32.xlu0 %v1006
    %v1008 = vpop.xlane.xlu0 %1007
    %v1009 = vrcp.pop %v1005
    %v1010 = vmul.f32 %v1005, %v1009
    %v1011 = vsub.f32 1.0, %v1010
    %v1012 = vmul.f32 %v1009, %v1011
    %v1013 = vadd.f32 %v1009, %v1012
    %vm1014 = vweird.f32 %v1005
    %vm1015 = vweird.f32 %v1009
    %vm1016 = vmor %vm1014, %vm1015
    %v1017 = vsel %vm1016, %v1009, %v1013
    %v1018 = vand.u32 2147483647, %v1005
    %vm1019 = vcmp.eq.f32.partialorder %v1018, 8.507059e+37
    %v1020 = vand.u32 %v1005, 2147483648
    %v1021 = vor.u32 1.1754944e-38, %v1020
    %v1022 = vsel %vm1019, %v1021, %v1017
    %v1023 = vmul.f32 %v1000, %v1022
    %v1024 = vrcp.pop %v1008
    %v1025 = vmul.f32 %v1008, %v1024
    %v1026 = vsub.f32 1.0, %v1025
    %v1027 = vmul.f32 %v1024, %v1026
    %v1028 = vadd.f32 %v1024, %v1027
    %vm1029 = vweird.f32 %v1008
    %vm1030 = vweird.f32 %v1024
    %vm1031 = vmor %vm1029, %vm1030
    %v1032 = vsel %vm1031, %v1024, %v1028
    %v1033 = vand.u32 2147483647, %v1008
    %vm1034 = vcmp.eq.f32.partialorder %v1033, 8.507059e+37
    %v1035 = vand.u32 %v1008, 2147483648
    %v1036 = vor.u32 1.1754944e-38, %v1035
    %v1037 = vsel %vm1034, %v1036, %v1032
    %v1038 = vmul.f32 %v1002, %v1037
    %v1040 = vsel %vm321, %v1023, 0
    %1042 = vmatpush.msra.mxu0 0.0
    %1043 = vmatpush.msra.mxu0 0.0
    %1044 = vmatpush.msra.mxu0 0.0
    %1045 = vmatpush.msra.mxu0 0.0
    %1046 = vmatpush.msra.mxu0 0.0
    %1047 = vmatpush.msra.mxu0 0.0
    %1048 = vmatpush.msra.mxu0 0.0
    %1049 = vmatpush.msra.mxu0 0.0
    %1050 = vmatpush.msra.mxu0 0.0
    %1051 = vmatpush.msra.mxu0 0.0
    %1052 = vmatpush.msra.mxu0 0.0
    %1053 = vmatpush.msra.mxu0 0.0
    %1054 = vmatpush.msra.mxu0 0.0
    %1055 = vmatpush.msra.mxu0 0.0
    %1056 = vmatpush.msra.mxu0 0.0
    %1057 = vmatpush.msra.mxu0 %v934
    %1058 = vmatmul.f32.gmra.mxu0 %v1040
    %v1059 = vpop.f32.mrf.mxu0
    %v1060 = vadd.f32 0.0, %v1059
    %1061 = vdwg.mxu0
    %v1063 = vsel %vm321, %v1038, 0
    %1065 = vmatpush.msra.mxu0 0.0
    %1066 = vmatpush.msra.mxu0 0.0
    %1067 = vmatpush.msra.mxu0 0.0
    %1068 = vmatpush.msra.mxu0 0.0
    %1069 = vmatpush.msra.mxu0 0.0
    %1070 = vmatpush.msra.mxu0 0.0
    %1071 = vmatpush.msra.mxu0 0.0
    %1072 = vmatpush.msra.mxu0 0.0
    %1073 = vmatpush.msra.mxu0 0.0
    %1074 = vmatpush.msra.mxu0 0.0
    %1075 = vmatpush.msra.mxu0 0.0
    %1076 = vmatpush.msra.mxu0 0.0
    %1077 = vmatpush.msra.mxu0 0.0
    %1078 = vmatpush.msra.mxu0 0.0
    %1079 = vmatpush.msra.mxu0 0.0
    %1080 = vmatpush.msra.mxu0 %v937
    %1081 = vmatmul.f32.gmra.mxu0 %v1063
    %v1082 = vpop.f32.mrf.mxu0
    %v1083 = vadd.f32 0.0, %v1082
    %1084 = vdwg.mxu0
    %1085 = vst.msk [vmem:[#allocation2] sm:$0xff] %vm268, %v1060
    %1086 = vst.msk [vmem:[#allocation2 + $0x8] sm:$0xff] %vm268, %v1083
    %1087 = vrot.lane.b32.xlu0 %v868, 112
    %v1088 = vpop.permute.xlu0 %1087
    %1089 = vrot.lane.b32.xlu0 %v901, 112
    %v1090 = vpop.permute.xlu0 %1089
    %v1091 = vsel %vm268, %v1088, 0
    %v1093 = vsel %vm268, %v1090, 0
    %1095 = vmatpush.xpose.msra.mxu0 0.0
    %1096 = vmatpush.xpose.msra.mxu0 0.0
    %1097 = vmatpush.xpose.msra.mxu0 0.0
    %1098 = vmatpush.xpose.msra.mxu0 0.0
    %1099 = vmatpush.xpose.msra.mxu0 0.0
    %1100 = vmatpush.xpose.msra.mxu0 0.0
    %1101 = vmatpush.xpose.msra.mxu0 0.0
    %1102 = vmatpush.xpose.msra.mxu0 0.0
    %1103 = vmatpush.xpose.msra.mxu0 0.0
    %1104 = vmatpush.xpose.msra.mxu0 0.0
    %1105 = vmatpush.xpose.msra.mxu0 0.0
    %1106 = vmatpush.xpose.msra.mxu0 0.0
    %1107 = vmatpush.xpose.msra.mxu0 0.0
    %1108 = vmatpush.xpose.msra.mxu0 0.0
    %1109 = vmatpush.xpose.msra.mxu0 0.0
    %1110 = vmatpush.xpose.msra.mxu0 %v1093
    %1111 = vmatmul.f32.gmra.mxu0 %v1091
    %v1112 = vpop.f32.mrf.mxu0
    %v1113 = vadd.f32 0.0, %v1112
    %1114 = vdwg.mxu0
    %1115 = vrot.lane.b32.xlu0 %v871, 112
    %v1116 = vpop.permute.xlu0 %1115
    %1117 = vrot.lane.b32.xlu0 %v904, 112
    %v1118 = vpop.permute.xlu0 %1117
    %v1119 = vsel %vm268, %v1116, 0
    %v1121 = vsel %vm268, %v1118, 0
    %1123 = vmatpush.xpose.msra.mxu0 0.0
    %1124 = vmatpush.xpose.msra.mxu0 0.0
    %1125 = vmatpush.xpose.msra.mxu0 0.0
    %1126 = vmatpush.xpose.msra.mxu0 0.0
    %1127 = vmatpush.xpose.msra.mxu0 0.0
    %1128 = vmatpush.xpose.msra.mxu0 0.0
    %1129 = vmatpush.xpose.msra.mxu0 0.0
    %1130 = vmatpush.xpose.msra.mxu0 0.0
    %1131 = vmatpush.xpose.msra.mxu0 0.0
    %1132 = vmatpush.xpose.msra.mxu0 0.0
    %1133 = vmatpush.xpose.msra.mxu0 0.0
    %1134 = vmatpush.xpose.msra.mxu0 0.0
    %1135 = vmatpush.xpose.msra.mxu0 0.0
    %1136 = vmatpush.xpose.msra.mxu0 0.0
    %1137 = vmatpush.xpose.msra.mxu0 0.0
    %1138 = vmatpush.xpose.msra.mxu0 %v1121
    %1139 = vmatmul.f32.gmra.mxu0 %v1119
    %v1140 = vpop.f32.mrf.mxu0
    %v1141 = vadd.f32 0.0, %v1140
    %1142 = vdwg.mxu0
    %v1143 = vsel %vm321, %v1113, -inf
    %1144 = vmax.xlane.f32.xlu0 %v1143
    %v1145 = vpop.xlane.xlu0 %1144
    %v1146 = vsel %vm321, %v1141, -inf
    %1147 = vmax.xlane.f32.xlu0 %v1146
    %v1148 = vpop.xlane.xlu0 %1147
    %v1149 = vsub.f32 %v1113, %v1145
    %v1150 = vsub.f32 %v1141, %v1148
    %v1151 = vmul.f32 %v1149, 1.442695
    %v1152 = vpow.pop %v1151
    %v1153 = vmul.f32 %v1150, 1.442695
    %v1154 = vpow.pop %v1153
    %v1155 = vsel %vm321, %v1152, 0.0
    %1156 = vadd.xlane.f32.xlu0 %v1155
    %v1157 = vpop.xlane.xlu0 %1156
    %v1158 = vsel %vm321, %v1154, 0.0
    %1159 = vadd.xlane.f32.xlu0 %v1158
    %v1160 = vpop.xlane.xlu0 %1159
    %v1161 = vrcp.pop %v1157
    %v1162 = vmul.f32 %v1157, %v1161
    %v1163 = vsub.f32 1.0, %v1162
    %v1164 = vmul.f32 %v1161, %v1163
    %v1165 = vadd.f32 %v1161, %v1164
    %vm1166 = vweird.f32 %v1157
    %vm1167 = vweird.f32 %v1161
    %vm1168 = vmor %vm1166, %vm1167
    %v1169 = vsel %vm1168, %v1161, %v1165
    %v1170 = vand.u32 2147483647, %v1157
    %vm1171 = vcmp.eq.f32.partialorder %v1170, 8.507059e+37
    %v1172 = vand.u32 %v1157, 2147483648
    %v1173 = vor.u32 1.1754944e-38, %v1172
    %v1174 = vsel %vm1171, %v1173, %v1169
    %v1175 = vmul.f32 %v1152, %v1174
    %v1176 = vrcp.pop %v1160
    %v1177 = vmul.f32 %v1160, %v1176
    %v1178 = vsub.f32 1.0, %v1177
    %v1179 = vmul.f32 %v1176, %v1178
    %v1180 = vadd.f32 %v1176, %v1179
    %vm1181 = vweird.f32 %v1160
    %vm1182 = vweird.f32 %v1176
    %vm1183 = vmor %vm1181, %vm1182
    %v1184 = vsel %vm1183, %v1176, %v1180
    %v1185 = vand.u32 2147483647, %v1160
    %vm1186 = vcmp.eq.f32.partialorder %v1185, 8.507059e+37
    %v1187 = vand.u32 %v1160, 2147483648
    %v1188 = vor.u32 1.1754944e-38, %v1187
    %v1189 = vsel %vm1186, %v1188, %v1184
    %v1190 = vmul.f32 %v1154, %v1189
    %1192 = vrot.lane.b32.xlu0 %v934, 112
    %v1193 = vpop.permute.xlu0 %1192
    %v1196 = vsel %vm321, %v1175, 0
    %1198 = vmatpush.msra.mxu0 0.0
    %1199 = vmatpush.msra.mxu0 0.0
    %1200 = vmatpush.msra.mxu0 0.0
    %1201 = vmatpush.msra.mxu0 0.0
    %1202 = vmatpush.msra.mxu0 0.0
    %1203 = vmatpush.msra.mxu0 0.0
    %1204 = vmatpush.msra.mxu0 0.0
    %1205 = vmatpush.msra.mxu0 0.0
    %1206 = vmatpush.msra.mxu0 0.0
    %1207 = vmatpush.msra.mxu0 0.0
    %1208 = vmatpush.msra.mxu0 0.0
    %1209 = vmatpush.msra.mxu0 0.0
    %1210 = vmatpush.msra.mxu0 0.0
    %1211 = vmatpush.msra.mxu0 0.0
    %1212 = vmatpush.msra.mxu0 0.0
    %1213 = vmatpush.msra.mxu0 %v1193
    %1214 = vmatmul.f32.gmra.mxu0 %v1196
    %v1215 = vpop.f32.mrf.mxu0
    %v1216 = vadd.f32 0.0, %v1215
    %1217 = vdwg.mxu0
    %1219 = vrot.lane.b32.xlu0 %v937, 112
    %v1220 = vpop.permute.xlu0 %1219
    %v1223 = vsel %vm321, %v1190, 0
    %1225 = vmatpush.msra.mxu0 0.0
    %1226 = vmatpush.msra.mxu0 0.0
    %1227 = vmatpush.msra.mxu0 0.0
    %1228 = vmatpush.msra.mxu0 0.0
    %1229 = vmatpush.msra.mxu0 0.0
    %1230 = vmatpush.msra.mxu0 0.0
    %1231 = vmatpush.msra.mxu0 0.0
    %1232 = vmatpush.msra.mxu0 0.0
    %1233 = vmatpush.msra.mxu0 0.0
    %1234 = vmatpush.msra.mxu0 0.0
    %1235 = vmatpush.msra.mxu0 0.0
    %1236 = vmatpush.msra.mxu0 0.0
    %1237 = vmatpush.msra.mxu0 0.0
    %1238 = vmatpush.msra.mxu0 0.0
    %1239 = vmatpush.msra.mxu0 0.0
    %1240 = vmatpush.msra.mxu0 %v1220
    %1241 = vmatmul.f32.gmra.mxu0 %v1223
    %v1242 = vpop.f32.mrf.mxu0
    %v1243 = vadd.f32 0.0, %v1242
    %1244 = vdwg.mxu0
    %1247 = vrot.lane.b32.xlu0 %v1216, 16
    %v1248 = vpop.permute.xlu0 %1247
    %1249 = vrot.lane.b32.xlu0 %v1243, 16
    %v1250 = vpop.permute.xlu0 %1249
    %1253 = vst.msk [vmem:[#allocation2] sm:$0xff] %vm584, %v1248
    %1254 = vst.msk [vmem:[#allocation2 + $0x8] sm:$0xff] %vm584, %v1250
    %v1255 = vld [vmem:[#allocation2] sm:$0xff]
    %v1256 = vld [vmem:[#allocation2 + $0x8] sm:$0xff]
    %s1257 = scalar_lea.vmem [#allocation11], 32
    %v1258 = vld [vmem:[%s1257] sm:$0xff]
    %v1259 = vld [vmem:[%s1257 + $0x8] sm:$0xff]
    %v1260 = vld [vmem:[%s1257 + $0x10] sm:$0xff]
    %v1261 = vld [vmem:[%s1257 + $0x18] sm:$0xff]
    %s1262 = scalar_lea.vmem %s10, 1
    %v1263 = vld [vmem:[%s1262] sm:$0x1]
    %v1265 = vperm.slane %v1263, 0
    %v1268 = vsel %vm176, %v1255, 0
    %v1271 = vsel %vm176, %v1256, 0
    %1273 = vmatpush.msra.mxu0 0.0
    %1274 = vmatpush.msra.mxu0 0.0
    %1275 = vmatpush.msra.mxu0 0.0
    %1276 = vmatpush.msra.mxu0 0.0
    %1277 = vmatpush.msra.mxu0 0.0
    %1278 = vmatpush.msra.mxu0 0.0
    %1279 = vmatpush.msra.mxu0 0.0
    %1280 = vmatpush.msra.mxu0 0.0
    %1281 = vmatpush.msra.mxu0 0.0
    %1282 = vmatpush.msra.mxu0 0.0
    %1283 = vmatpush.msra.mxu0 0.0
    %1284 = vmatpush.msra.mxu0 0.0
    %1285 = vmatpush.msra.mxu0 %v1261
    %1286 = vmatpush.msra.mxu0 %v1260
    %1287 = vmatpush.msra.mxu0 %v1259
    %1288 = vmatpush.msra.mxu0 %v1258
    %1289 = vmatmul.f32.gmra.mxu0 %v1268
    %v1290 = vpop.f32.mrf.mxu0
    %v1291 = vadd.f32 %v1265, %v1290
    %1292 = vmatmul.f32.gmra.mxu0 %v1271
    %v1293 = vpop.f32.mrf.mxu0
    %v1294 = vadd.f32 %v1265, %v1293
    %1295 = vdwg.mxu0
    %v1296 = vadd.f32 %v774, %v1291
    %v1297 = vadd.f32 %v775, %v1294
    %s1298 = scalar_lea.vmem %s11, 1
    %v1299 = vld [vmem:[%s1298] sm:$0x1]
    %s1300 = scalar_lea.vmem %s12, 1
    %v1301 = vld [vmem:[%s1300] sm:$0x1]
    %v1302 = vsel %vm176, %v1296, 0.0
    %1303 = vadd.xlane.f32.xlu0 %v1302
    %v1304 = vpop.xlane.xlu0 %1303
    %v1305 = vsel %vm176, %v1297, 0.0
    %1306 = vadd.xlane.f32.xlu0 %v1305
    %v1307 = vpop.xlane.xlu0 %1306
    %v1308 = vmul.f32 %v1304, %v642
    %v1309 = vmul.f32 %v1307, %v642
    %v1310 = vsub.f32 %v1296, %v1308
    %v1311 = vsub.f32 %v1297, %v1309
    %v1312 = vmul.f32 %v1310, %v1310
    %v1313 = vmul.f32 %v1311, %v1311
    %v1314 = vsel %vm176, %v1312, 0.0
    %1315 = vadd.xlane.f32.xlu0 %v1314
    %v1316 = vpop.xlane.xlu0 %1315
    %v1317 = vsel %vm176, %v1313, 0.0
    %1318 = vadd.xlane.f32.xlu0 %v1317
    %v1319 = vpop.xlane.xlu0 %1318
    %v1320 = vmul.f32 %v1316, %v642
    %v1321 = vmul.f32 %v1319, %v642
    %v1322 = vadd.f32 %v1320, 1e-05
    %v1323 = vadd.f32 %v1321, 1e-05
    %v1324 = vrsqrt.pop %v1322
    %v1325 = vmul.f32 %v1324, %v1322
    %v1326 = vmul.f32 %v1325, %v1324
    %v1327 = vmul.f32 0.5, %v1326
    %v1328 = vsub.f32 1.5, %v1327
    %v1329 = vmul.f32 %v1324, %v1328
    %vm1330 = vweird.f32 %v1322
    %vm1331 = vweird.f32 %v1324
    %vm1332 = vmor %vm1330, %vm1331
    %v1333 = vsel %vm1332, %v1324, %v1329
    %v1334 = vrsqrt.pop %v1323
    %v1335 = vmul.f32 %v1334, %v1323
    %v1336 = vmul.f32 %v1335, %v1334
    %v1337 = vmul.f32 0.5, %v1336
    %v1338 = vsub.f32 1.5, %v1337
    %v1339 = vmul.f32 %v1334, %v1338
    %vm1340 = vweird.f32 %v1323
    %vm1341 = vweird.f32 %v1334
    %vm1342 = vmor %vm1340, %vm1341
    %v1343 = vsel %vm1342, %v1334, %v1339
    %v1344 = vmul.f32 %v1310, %v1333
    %v1345 = vmul.f32 %v1311, %v1343
    %v1347 = vperm.slane %v1299, 0
    %v1349 = vmul.f32 %v1344, %v1347
    %v1350 = vmul.f32 %v1345, %v1347
    %v1352 = vperm.slane %v1301, 0
    %v1354 = vadd.f32 %v1349, %v1352
    %v1355 = vadd.f32 %v1350, %v1352
    %s1356 = scalar_lea.vmem [#allocation12], 32
    %v1357 = vld [vmem:[%s1356] sm:$0xff]
    %v1358 = vld [vmem:[%s1356 + $0x8] sm:$0xff]
    %v1359 = vld [vmem:[%s1356 + $0x10] sm:$0xff]
    %v1360 = vld [vmem:[%s1356 + $0x18] sm:$0xff]
    %s1361 = scalar_lea.vmem [#allocation14], 1
    %v1362 = vld [vmem:[%s1361] sm:$0x1]
    %v1364 = vperm.slane %v1362, 0
    %v1367 = vsel %vm176, %v1354, 0
    %v1370 = vsel %vm176, %v1355, 0
    %1372 = vmatpush.msra.mxu0 0.0
    %1373 = vmatpush.msra.mxu0 0.0
    %1374 = vmatpush.msra.mxu0 0.0
    %1375 = vmatpush.msra.mxu0 0.0
    %1376 = vmatpush.msra.mxu0 0.0
    %1377 = vmatpush.msra.mxu0 0.0
    %1378 = vmatpush.msra.mxu0 0.0
    %1379 = vmatpush.msra.mxu0 0.0
    %1380 = vmatpush.msra.mxu0 0.0
    %1381 = vmatpush.msra.mxu0 0.0
    %1382 = vmatpush.msra.mxu0 0.0
    %1383 = vmatpush.msra.mxu0 0.0
    %1384 = vmatpush.msra.mxu0 %v1360
    %1385 = vmatpush.msra.mxu0 %v1359
    %1386 = vmatpush.msra.mxu0 %v1358
    %1387 = vmatpush.msra.mxu0 %v1357
    %1388 = vmatmul.f32.gmra.mxu0 %v1367
    %v1389 = vpop.f32.mrf.mxu0
    %v1390 = vadd.f32 %v1364, %v1389
    %1391 = vmatmul.f32.gmra.mxu0 %v1370
    %v1392 = vpop.f32.mrf.mxu0
    %v1393 = vadd.f32 %v1364, %v1392
    %1394 = vdwg.mxu0
    %v1395 = vmax.f32 %v1390, 0.0
    %v1396 = vmax.f32 %v1393, 0.0
    %s1397 = scalar_lea.vmem %s15, 64
    %v1398 = vld [vmem:[%s1397] sm:$0xff]
    %v1399 = vld [vmem:[%s1397 + $0x8] sm:$0xff]
    %v1400 = vld [vmem:[%s1397 + $0x10] sm:$0xff]
    %v1401 = vld [vmem:[%s1397 + $0x18] sm:$0xff]
    %v1402 = vld [vmem:[%s1397 + $0x20] sm:$0xff]
    %v1403 = vld [vmem:[%s1397 + $0x28] sm:$0xff]
    %v1404 = vld [vmem:[%s1397 + $0x30] sm:$0xff]
    %v1405 = vld [vmem:[%s1397 + $0x38] sm:$0xff]
    %v1407 = vsel %vm738, %v1395, 0
    %v1410 = vsel %vm738, %v1396, 0
    %1412 = vmatpush.msra.mxu0 0.0
    %1413 = vmatpush.msra.mxu0 0.0
    %1414 = vmatpush.msra.mxu0 0.0
    %1415 = vmatpush.msra.mxu0 0.0
    %1416 = vmatpush.msra.mxu0 0.0
    %1417 = vmatpush.msra.mxu0 0.0
    %1418 = vmatpush.msra.mxu0 0.0
    %1419 = vmatpush.msra.mxu0 0.0
    %1420 = vmatpush.msra.mxu0 %v1405
    %1421 = vmatpush.msra.mxu0 %v1404
    %1422 = vmatpush.msra.mxu0 %v1403
    %1423 = vmatpush.msra.mxu0 %v1402
    %1424 = vmatpush.msra.mxu0 %v1401
    %1425 = vmatpush.msra.mxu0 %v1400
    %1426 = vmatpush.msra.mxu0 %v1399
    %1427 = vmatpush.msra.mxu0 %v1398
    %1428 = vmatmul.f32.gmra.mxu0 %v1407
    %v1429 = vpop.f32.mrf.mxu0
    %v1430 = vadd.f32 0.0, %v1429
    %1431 = vmatmul.f32.gmra.mxu0 %v1410
    %v1432 = vpop.f32.mrf.mxu0
    %v1433 = vadd.f32 0.0, %v1432
    %1434 = vdwg.mxu0
    %v1435 = vadd.f32 %v1296, %v1430
    %v1436 = vadd.f32 %v1297, %v1433
    %s1437 = scalar_lea.vmem %s16, 1
    %v1438 = vld [vmem:[%s1437] sm:$0x1]
    %v1440 = vperm.slane %v1438, 0
    %v1442 = vadd.f32 %v1435, %v1440
    %v1443 = vadd.f32 %v1436, %v1440
    %1444 = vst.msk [vmem:[#allocation15] sm:$0xff] %vm176, %v1442
    %1445 = vst.msk [vmem:[#allocation15 + $0x8] sm:$0xff] %vm176, %v1443
    // Predicated region
    $region98: #{tpu_custom_call.1} parent=1 // pred_check
      _
    $region99: #{tpu_custom_call.1} parent=1 // pred_check_branch
      %1447 = sbr.rel (0) target = $region101
    $region100: #{tpu_custom_call.1} parent=1 // pred_region
      %1449 = vsyncadd [#allocation5], 0
      %s1450 = sshll.u32 [#allocation15], 4
      %s1451 = int_to_ptr.vmem [resolvable:$true] %s1450
      %s1452 = sshll.u32 %s17, 4
      %s1453 = int_to_ptr.hbm [resolvable:$true] %s1452
      %1458 = dma.vmem_to_hbm [thread:$0]  %s1451, 256, %s1453, [#allocation5], 128, 128, 8
    $region101: #{tpu_custom_call.1} parent=1 // pred_fallthru
      _
    // Predicated region
    $region102: #{tpu_custom_call.1} parent=1 // pred_check
      _
    $region103: #{tpu_custom_call.1} parent=1 // pred_check_branch
      %1460 = sbr.rel (0) target = $region105
    $region104: #{tpu_custom_call.1} parent=1 // pred_region
      %1462 = dma.done [#allocation5], 256
    $region105: #{tpu_custom_call.1} parent=1 // pred_fallthru
      _
    %1463 = vsyncpa [#allocation4], 1
    %1464 = vsyncpa [#allocation7], 1
    %1465 = vsyncpa [#allocation10], 1
    %1466 = vsyncpa [#allocation13], 1
    %1467 = vsyncpa [#allocation5], 1

</llo_original>
